<compile_context>
chip_gen: v7x
topology: tpu7x:2x2x1
jax: 0.10.0
libtpu: 0.0.40
codegen_flags: <defaults>
</compile_context>

<pallas_src>
import functools

import jax
import jax.numpy as jnp
from jax.experimental import pallas as pl
from jax.experimental.pallas import tpu as pltpu

ALPHA = 1.0       # default_generator_loss alpha
BETA = 1.0        # default_generator_loss beta
LR = 1e-5         # config['lr']
ADAM_B1, ADAM_B2, ADAM_EPS = 0.9, 0.999, 1e-8

_KP = 128         # class dim padded to one full lane register


def _autoaug_fused_kernel(params_ref, x_ref, wcat_ref, ylab_ref,
                          xout_ref, stats_ref, *, num_classes):
    # params_ref: SMEM (2,) f32 = [brightness_magnitude, contrast_magnitude]
    b = params_ref[0]
    c = params_ref[1]

    x_in = x_ref[...]                               # (TB, D) input dtype
    x32 = x_in.astype(jnp.float32)                  # elementwise math in f32
                                                    # (v5e VPU has no bf16)

    # differentiable magnitude aug + clamp to valid image range
    z = x32 * (1.0 + c) + b
    xa = jnp.clip(z, 0.0, 1.0)

    # fused concatenated output: rows [0,B) = aug(x), rows [B,2B) = x untouched
    xout_ref[0] = xa.astype(xout_ref.dtype)
    xout_ref[1] = x_in

    wcat = wcat_ref[...]                            # (D, 2*KP) bf16 [student|teacher]
    mm_dtype = wcat.dtype
    kp = wcat.shape[-1] // 2
    tb = x_in.shape[0]

    ylab = ylab_ref[...]                            # (TB, 1) int32, -1 on padded rows
    valid = (ylab >= 0).astype(jnp.float32)         # (TB, 1) batch-padding row mask

    # clamp-gradient mask (d xa / d z)
    cmask = jnp.logical_and(z >= 0.0, z <= 1.0).astype(jnp.float32)

    # Three bf16 MXU passes over the SAME resident (D, 2*KP) weight — no
    # transposed dot_general and no (TB, D) gradient intermediate:
    #   logits = xa @ W,   mw = cmask @ W,   mxw = (cmask*x) @ W
    logits = jnp.dot(xa.astype(mm_dtype), wcat,
                     preferred_element_type=jnp.float32)          # (TB, 2*KP)
    mw = jnp.dot(cmask.astype(mm_dtype), wcat,
                 preferred_element_type=jnp.float32)               # (TB, 2*KP)
    mxw = jnp.dot((cmask * x32).astype(mm_dtype), wcat,
                  preferred_element_type=jnp.float32)              # (TB, 2*KP)

    logits_s = logits[:, :kp]
    logits_t = logits[:, kp:]

    # one-hot built in-kernel from the raw labels (zeros on padded rows)
    lane = jax.lax.broadcasted_iota(jnp.int32, (1, kp), 1)
    neg_bias = jnp.where(lane < num_classes, 0.0, -1e30)           # mask pad lanes
    lane_r = jax.lax.broadcasted_iota(jnp.int32, (tb, kp), 1)
    yoh = (lane_r == ylab).astype(jnp.float32)                     # (TB, KP)

    def softmax_ce(head_logits):
        l = head_logits + neg_bias
        m = jnp.max(l, axis=-1, keepdims=True)
        e = jnp.exp(l - m)
        s = jnp.sum(e, axis=-1, keepdims=True)
        # approx reciprocal (EUP) only feeds the aug-magnitude grads; the loss
        # path below uses the exact log(s).
        p = e * pl.reciprocal(s, approx=True)
        logp = (l - m) - jnp.log(s)
        nll = -jnp.sum(yoh * logp, axis=-1, keepdims=True)         # (TB, 1)
        return nll, p

    nll_t, p_t = softmax_ce(logits_t)
    nll_s, p_s = softmax_ce(logits_s)

    t_sum = jnp.sum(nll_t)                          # per-tile CE sums (mean in wrapper)
    s_sum = jnp.sum(nll_s)

    # Analytic backward of loss = ALPHA*t_loss - BETA*s_loss w.r.t. (b, c):
    #   gb = sum_ij mask_ij * (d @ W^T)_ij = sum_ik d_ik (mask @ W)_ik
    #   gc likewise with mask*x.   (1/B factor applied in the wrapper.)
    d_t = (ALPHA * valid) * (p_t - yoh)             # padded rows zeroed via `valid`
    d_s = (-BETA * valid) * (p_s - yoh)
    gb = jnp.sum(d_s * mw[:, :kp]) + jnp.sum(d_t * mw[:, kp:])
    gc = jnp.sum(d_s * mxw[:, :kp]) + jnp.sum(d_t * mxw[:, kp:])

    # pack the four per-tile partial scalars into one lane-dense store
    lane8 = jax.lax.broadcasted_iota(jnp.int32, (8, 128), 1)
    packed = jnp.where(lane8 == 0, t_sum, 0.0)
    packed = jnp.where(lane8 == 1, s_sum, packed)
    packed = jnp.where(lane8 == 2, gb, packed)
    packed = jnp.where(lane8 == 3, gc, packed)
    stats_ref[0] = packed


def _round_up(n, m):
    return ((n + m - 1) // m) * m


def _vmem_capacity_bytes():
    """Generation-aware VMEM capacity (falls back to the v7x per-core 64 MiB)."""
    try:
        return int(pltpu.get_tpu_info().vmem_capacity_bytes)
    except Exception:
        return 64 * 1024 * 1024


def _pick_batch_tile(B, D, x_itemsize, w_bytes, vmem_limit):
    """Choose the batch tile TB (multiple of 8) and the padded batch size."""
    # live bytes per batch row: double-buffered x-in stream + double-buffered
    # (2, TB, D) output stream + ~6 f32 and ~3 bf16 (TB, D) body temporaries
    per_row = (2 * D * x_itemsize
               + 4 * D * x_itemsize
               + 6 * D * 4 + 3 * D * 2)
    # NOTE: the resident weight is counted twice (pallas_call double-buffers it
    # even with a constant index_map; pipeline_mode=pl.Buffered(1) would drop
    # the second copy but is left off here for portability).
    budget = int(vmem_limit * 0.8) - 2 * w_bytes - (1 << 20)
    cap = max(8, budget // per_row)
    tb = min(int(cap), 1024)
    tb = max((tb // 8) * 8, 8)
    if B >= 16:
        # keep >= 2 grid steps so the "parallel" axis feeds both v7x TensorCores
        tb = min(tb, _round_up(pl.cdiv(B, 2), 8))
    tb = min(tb, _round_up(B, 8))
    b_pad = _round_up(B, tb)
    return tb, b_pad


def prepare_classifier_weights(w_student, w_teacher):
    """Fused, lane-padded, bf16 classifier weight (D, 2*128) [student | teacher].

    Built ONCE per training run and reused by every forward call (hoisted out
    of the per-call path as suggested by the perf review)."""
    D, K = w_student.shape
    assert K <= _KP
    pad = ((0, 0), (0, _KP - K))
    w_cat = jnp.concatenate(
        [jnp.pad(w_student, pad), jnp.pad(w_teacher, pad)], axis=1)   # (D, 2*KP)
    return w_cat.astype(jnp.bfloat16)


def differentiable_autoaug_forward(x, y, w_cat, aug_params, num_classes):
    """Returns (cat([x_aug, x], 0), cat([y, y], 0), updated_aug_params, loss)."""
    B, C, H, W = x.shape
    D = C * H * W
    KP = _KP
    assert w_cat.shape == (D, 2 * KP)

    x_flat = x.reshape(B, D)                 # native dtype; kernel upcasts in VMEM
    ylab = y.astype(jnp.int32).reshape(B, 1)

    vmem_cap = _vmem_capacity_bytes()
    vmem_limit = min((vmem_cap * 3) // 4, 100 * 1024 * 1024)   # ~48 MiB v7x, ~96 MiB v5e/v6e

    w_bytes = w_cat.size * w_cat.dtype.itemsize
    TB, B_pad = _pick_batch_tile(B, D, x.dtype.itemsize, w_bytes, vmem_limit)
    n_tiles = B_pad // TB

    if B_pad != B:
        # ragged batch: pad rows (masked out via label = -1 inside the kernel)
        x_flat = jnp.pad(x_flat, ((0, B_pad - B), (0, 0)))
        ylab = jnp.pad(ylab, ((0, B_pad - B), (0, 0)), constant_values=-1)

    kernel = functools.partial(_autoaug_fused_kernel, num_classes=num_classes)

    out_shapes = (
        jax.ShapeDtypeStruct((2, B_pad, D), x.dtype),           # [aug(x); x] fused
        jax.ShapeDtypeStruct((n_tiles, 8, 128), jnp.float32),   # packed partials
    )

    fused = pl.pallas_call(
        kernel,
        out_shape=out_shapes,
        grid=(n_tiles,),
        in_specs=[
            pl.BlockSpec(memory_space=pltpu.MemorySpace.SMEM),   # aug params
            pl.BlockSpec((TB, D), lambda i: (i, 0)),             # x batch tile
            pl.BlockSpec((D, 2 * KP), lambda i: (0, 0)),         # weights, VMEM-resident
            pl.BlockSpec((TB, 1), lambda i: (i, 0)),             # int32 labels tile
        ],
        out_specs=(
            pl.BlockSpec((2, TB, D), lambda i: (0, i, 0)),
            pl.BlockSpec((1, 8, 128), lambda i: (i, 0, 0)),
        ),
        compiler_params=pltpu.CompilerParams(
            dimension_semantics=("parallel",),                   # megacore on v7x
            vmem_limit_bytes=int(vmem_limit)),
    )

    x_out_flat, stats = fused(aug_params.astype(jnp.float32), x_flat, w_cat, ylab)

    # reduce per-tile partials; apply the 1/B mean factor here
    stat = jnp.sum(stats[:, 0, :], axis=0)          # (128,)
    inv_b = 1.0 / B
    t_loss = stat[0] * inv_b
    s_loss = stat[1] * inv_b
    loss = ALPHA * t_loss - BETA * s_loss
    grads = jnp.stack([stat[2], stat[3]]) * inv_b   # [dL/db, dL/dc]

    # --- glue: single (first-step) Adam update on aug magnitude params ------
    # TODO(synk): persistent Adam (m, v) state across forward() calls (the
    # PyTorch module keeps self.optimizer); here we model one fresh Adam step.
    m = (1.0 - ADAM_B1) * grads
    v = (1.0 - ADAM_B2) * grads * grads
    m_hat = m / (1.0 - ADAM_B1)
    v_hat = v / (1.0 - ADAM_B2)
    new_params = aug_params - LR * m_hat / (jnp.sqrt(v_hat) + ADAM_EPS)
    new_params = jnp.maximum(new_params, 0.0)       # clamp(): magnitude_range >= 0

    # forward return value: aug(x) uses the PRE-update params, as in the PyTorch
    # loop where aug(x) is computed before optimizer.step().
    x_out = x_out_flat[:, :B, :].reshape(2 * B, C, H, W)   # rows [0,B)=aug(x), [B,2B)=x
    y_out = jnp.concatenate([y, y], axis=0)
    return x_out, y_out, new_params, loss


if __name__ == "__main__":
    key = jax.random.PRNGKey(0)
    k_x, k_y, k_s, k_t = jax.random.split(key, 4)

    B, C, H, W, K = 2, 4, 16, 16, 10
    D = C * H * W

    x = jax.random.uniform(k_x, (B, C, H, W), dtype=jnp.float32)
    y = jax.random.randint(k_y, (B,), 0, K, dtype=jnp.int32)

    # deterministic synthetic "student"/"teacher" linear classifiers
    w_student = 0.02 * jax.random.normal(k_s, (D, K), dtype=jnp.float32)
    w_teacher = 0.02 * jax.random.normal(k_t, (D, K), dtype=jnp.float32)
    # built once per training run (hoisted out of the forward path)
    w_cat = prepare_classifier_weights(w_student, w_teacher)

    aug_params = jnp.array([0.1, 0.1], dtype=jnp.float32)

    x_out, y_out, new_params, loss = differentiable_autoaug_forward(
        x, y, w_cat, aug_params, K)
    jax.block_until_ready((x_out, y_out, new_params, loss))

    assert x_out.shape == (2 * B, C, H, W)
    assert y_out.shape == (2 * B,)
    assert new_params.shape == (2,)

    # in-kernel aug must match clip(x*(1+c)+b, 0, 1); second half is x untouched
    b0, c0 = float(aug_params[0]), float(aug_params[1])
    ref_aug = jnp.clip(x * (1.0 + c0) + b0, 0.0, 1.0)
    assert jnp.allclose(x_out[:B], ref_aug, atol=1e-6)
    assert jnp.array_equal(x_out[B:], x)
    assert jnp.array_equal(y_out, jnp.concatenate([y, y]))
    assert bool(jnp.isfinite(loss))

    # pure-JAX f32 reference for the loss (bf16 MXU in-kernel -> loose tol)
    xa_flat = ref_aug.reshape(B, D)
    logits_s_ref = xa_flat @ w_student
    logits_t_ref = xa_flat @ w_teacher

    def _ce(lo):
        return -jnp.mean(jax.nn.log_softmax(lo, axis=-1)[jnp.arange(B), y])

    loss_ref = ALPHA * _ce(logits_t_ref) - BETA * _ce(logits_s_ref)
    assert jnp.allclose(loss, loss_ref, atol=5e-2), (loss, loss_ref)

    print("KERNEL_OK")
</pallas_src>

<mosaic_0001>
module attributes {stable_mosaic.version = 11 : i64} {
  func.func @_autoaug_fused_kernel(%arg0: i32, %arg1: memref<2xf32, #tpu.memory_space<smem>>, %arg2: memref<8x1024xf32, #tpu.memory_space<vmem>>, %arg3: memref<1024x256xbf16, #tpu.memory_space<vmem>>, %arg4: memref<8x1xi32, #tpu.memory_space<vmem>>, %arg5: memref<2x8x1024xf32, #tpu.memory_space<vmem>>, %arg6: memref<1x8x128xf32, #tpu.memory_space<vmem>>) attributes {dimension_semantics = [#tpu.dimension_semantics<parallel>], iteration_bounds = array<i64: 1>, scalar_prefetch = 0 : i64, scratch_operands = 0 : i64, tpu.core_type = #tpu.core_type<tc>, window_params = [{transform_indices = @transform_0, window_bounds = array<i64: 2>}, {transform_indices = @transform_1, window_bounds = array<i64: 8, 1024>}, {pipeline_mode = #tpu.pipeline_mode<synchronous>, transform_indices = @transform_2, window_bounds = array<i64: 1024, 256>}, {transform_indices = @transform_3, window_bounds = array<i64: 8, 1>}, {transform_indices = @transform_4, window_bounds = array<i64: 2, 8, 1024>}, {transform_indices = @transform_5, window_bounds = array<i64: 1, 8, 128>}]} {
    %c0 = arith.constant 0 : index
    %0 = memref.load %arg1[%c0] : memref<2xf32, #tpu.memory_space<smem>>
    %c1 = arith.constant 1 : index
    %1 = memref.load %arg1[%c1] : memref<2xf32, #tpu.memory_space<smem>>
    %c0_0 = arith.constant 0 : index
    %c0_1 = arith.constant 0 : index
    %2 = vector.load %arg2[%c0_0, %c0_1] : memref<8x1024xf32, #tpu.memory_space<vmem>>, vector<8x1024xf32>
    %cst = arith.constant 1.000000e+00 : f32
    %3 = arith.addf %cst, %1 : f32
    %4 = vector.broadcast %3 : f32 to vector<8x1024xf32>
    %5 = arith.mulf %2, %4 : vector<8x1024xf32>
    %6 = vector.broadcast %0 : f32 to vector<8x1024xf32>
    %7 = arith.addf %5, %6 : vector<8x1024xf32>
    %cst_2 = arith.constant 0.000000e+00 : f32
    %cst_3 = arith.constant 1.000000e+00 : f32
    %8 = vector.broadcast %cst_2 : f32 to vector<8x1024xf32>
    %9 = arith.maximumf %8, %7 : vector<8x1024xf32>
    %10 = vector.broadcast %cst_3 : f32 to vector<8x1024xf32>
    %11 = arith.minimumf %10, %9 : vector<8x1024xf32>
    %c0_4 = arith.constant 0 : index
    %c0_5 = arith.constant 0 : index
    %c0_6 = arith.constant 0 : index
    %12 = vector.load %arg5[%c0_4, %c0_5, %c0_6] : memref<2x8x1024xf32, #tpu.memory_space<vmem>>, vector<1x8x1024xf32>
    %13 = vector.shape_cast %12 : vector<1x8x1024xf32> to vector<8x1024xf32>
    %14 = vector.shape_cast %11 : vector<8x1024xf32> to vector<1x8x1024xf32>
    tpu.vector_store %arg5[%c0_4, %c0_5, %c0_6], %14 {strides = array<i32>} : memref<2x8x1024xf32, #tpu.memory_space<vmem>>, vector<1x8x1024xf32>,
    %c1_7 = arith.constant 1 : index
    %c0_8 = arith.constant 0 : index
    %c0_9 = arith.constant 0 : index
    %15 = vector.load %arg5[%c1_7, %c0_8, %c0_9] : memref<2x8x1024xf32, #tpu.memory_space<vmem>>, vector<1x8x1024xf32>
    %16 = vector.shape_cast %15 : vector<1x8x1024xf32> to vector<8x1024xf32>
    %17 = vector.shape_cast %2 : vector<8x1024xf32> to vector<1x8x1024xf32>
    tpu.vector_store %arg5[%c1_7, %c0_8, %c0_9], %17 {strides = array<i32>} : memref<2x8x1024xf32, #tpu.memory_space<vmem>>, vector<1x8x1024xf32>,
    %c0_10 = arith.constant 0 : index
    %c0_11 = arith.constant 0 : index
    %18 = vector.load %arg3[%c0_10, %c0_11] : memref<1024x256xbf16, #tpu.memory_space<vmem>>, vector<1024x256xbf16>
    %c0_12 = arith.constant 0 : index
    %c0_13 = arith.constant 0 : index
    %19 = vector.load %arg4[%c0_12, %c0_13] : memref<8x1xi32, #tpu.memory_space<vmem>>, vector<8x1xi32>
    %c0_i32 = arith.constant 0 : i32
    %20 = vector.broadcast %c0_i32 : i32 to vector<8x1xi32>
    %21 = arith.cmpi sge, %19, %20 : vector<8x1xi32>
    %22 = arith.extui %21 : vector<8x1xi1> to vector<8x1xi32>
    %23 = arith.sitofp %22 : vector<8x1xi32> to vector<8x1xf32>
    %cst_14 = arith.constant 0.000000e+00 : f32
    %24 = vector.broadcast %cst_14 : f32 to vector<8x1024xf32>
    %25 = arith.cmpf oge, %7, %24 : vector<8x1024xf32>
    %cst_15 = arith.constant 1.000000e+00 : f32
    %26 = vector.broadcast %cst_15 : f32 to vector<8x1024xf32>
    %27 = arith.cmpf ole, %7, %26 : vector<8x1024xf32>
    %28 = arith.andi %25, %27 : vector<8x1024xi1>
    %29 = arith.extui %28 : vector<8x1024xi1> to vector<8x1024xi32>
    %30 = arith.sitofp %29 : vector<8x1024xi32> to vector<8x1024xf32>
    %31 = arith.truncf %11 : vector<8x1024xf32> to vector<8x1024xbf16>
    %cst_16 = arith.constant dense<0.000000e+00> : vector<8x256xf32>
    %32 = tpu.matmul %31, %18, %cst_16 {dimension_numbers = #tpu.dot_dimension_numbers<[1], [0], [0], [1], [0, 0, 1, 1], [], []>} : vector<8x1024xbf16>, vector<1024x256xbf16>, vector<8x256xf32> -> vector<8x256xf32>
    %33 = arith.truncf %30 : vector<8x1024xf32> to vector<8x1024xbf16>
    %cst_17 = arith.constant dense<0.000000e+00> : vector<8x256xf32>
    %34 = tpu.matmul %33, %18, %cst_17 {dimension_numbers = #tpu.dot_dimension_numbers<[1], [0], [0], [1], [0, 0, 1, 1], [], []>} : vector<8x1024xbf16>, vector<1024x256xbf16>, vector<8x256xf32> -> vector<8x256xf32>
    %35 = arith.mulf %30, %2 : vector<8x1024xf32>
    %36 = arith.truncf %35 : vector<8x1024xf32> to vector<8x1024xbf16>
    %cst_18 = arith.constant dense<0.000000e+00> : vector<8x256xf32>
    %37 = tpu.matmul %36, %18, %cst_18 {dimension_numbers = #tpu.dot_dimension_numbers<[1], [0], [0], [1], [0, 0, 1, 1], [], []>} : vector<8x1024xbf16>, vector<1024x256xbf16>, vector<8x256xf32> -> vector<8x256xf32>
    %38 = vector.extract_strided_slice %32 {offsets = [0, 0], sizes = [8, 128], strides = [1, 1]} : vector<8x256xf32> to vector<8x128xf32>
    %39 = vector.extract_strided_slice %32 {offsets = [0, 128], sizes = [8, 128], strides = [1, 1]} : vector<8x256xf32> to vector<8x128xf32>
    %40 = tpu.iota {dimensions = array<i32: 1>} : vector<1x128xi32>
    %c10_i32 = arith.constant 10 : i32
    %41 = vector.broadcast %c10_i32 : i32 to vector<1x128xi32>
    %42 = arith.cmpi slt, %40, %41 : vector<1x128xi32>
    %cst_19 = arith.constant 0.000000e+00 : f32
    %cst_20 = arith.constant -1.000000e+30 : f32
    %43 = vector.broadcast %cst_19 : f32 to vector<1x128xf32>
    %44 = vector.broadcast %cst_20 : f32 to vector<1x128xf32>
    %45 = arith.select %42, %43, %44 : vector<1x128xi1>, vector<1x128xf32>
    %46 = tpu.iota {dimensions = array<i32: 1>} : vector<8x128xi32>
    %47 = vector.broadcast %19 : vector<8x1xi32> to vector<8x128xi32>
    %48 = arith.cmpi eq, %46, %47 : vector<8x128xi32>
    %49 = arith.extui %48 : vector<8x128xi1> to vector<8x128xi32>
    %50 = arith.sitofp %49 : vector<8x128xi32> to vector<8x128xf32>
    %51 = vector.broadcast %45 : vector<1x128xf32> to vector<8x128xf32>
    %52 = arith.addf %39, %51 : vector<8x128xf32>
    %cst_21 = arith.constant dense<0xFF800000> : vector<8xf32>
    %53 = vector.multi_reduction <maximumf>, %52, %cst_21 [1] : vector<8x128xf32> to vector<8xf32>
    %54 = vector.shape_cast %53 : vector<8xf32> to vector<8x1xf32>
    %55 = vector.broadcast %54 : vector<8x1xf32> to vector<8x128xf32>
    %56 = arith.subf %52, %55 : vector<8x128xf32>
    %57 = math.exp %56 : vector<8x128xf32>
    %cst_22 = arith.constant dense<0.000000e+00> : vector<8xf32>
    %58 = vector.multi_reduction <add>, %57, %cst_22 [1] : vector<8x128xf32> to vector<8xf32>
    %59 = vector.shape_cast %58 : vector<8xf32> to vector<8x1xf32>
    %60 = tpu.reciprocal %59 {approx = true} : vector<8x1xf32> -> vector<8x1xf32>
    %61 = vector.broadcast %60 : vector<8x1xf32> to vector<8x128xf32>
    %62 = arith.mulf %57, %61 : vector<8x128xf32>
    %63 = vector.broadcast %54 : vector<8x1xf32> to vector<8x128xf32>
    %64 = arith.subf %52, %63 : vector<8x128xf32>
    %65 = math.log %59 : vector<8x1xf32>
    %66 = vector.broadcast %65 : vector<8x1xf32> to vector<8x128xf32>
    %67 = arith.subf %64, %66 : vector<8x128xf32>
    %68 = arith.mulf %50, %67 : vector<8x128xf32>
    %cst_23 = arith.constant dense<0.000000e+00> : vector<8xf32>
    %69 = vector.multi_reduction <add>, %68, %cst_23 [1] : vector<8x128xf32> to vector<8xf32>
    %70 = vector.shape_cast %69 : vector<8xf32> to vector<8x1xf32>
    %cst_24 = arith.constant 0.000000e+00 : f32
    %71 = vector.broadcast %cst_24 : f32 to vector<8x1xf32>
    %72 = arith.subf %71, %70 : vector<8x1xf32>
    %73 = vector.broadcast %45 : vector<1x128xf32> to vector<8x128xf32>
    %74 = arith.addf %38, %73 : vector<8x128xf32>
    %cst_25 = arith.constant dense<0xFF800000> : vector<8xf32>
    %75 = vector.multi_reduction <maximumf>, %74, %cst_25 [1] : vector<8x128xf32> to vector<8xf32>
    %76 = vector.shape_cast %75 : vector<8xf32> to vector<8x1xf32>
    %77 = vector.broadcast %76 : vector<8x1xf32> to vector<8x128xf32>
    %78 = arith.subf %74, %77 : vector<8x128xf32>
    %79 = math.exp %78 : vector<8x128xf32>
    %cst_26 = arith.constant dense<0.000000e+00> : vector<8xf32>
    %80 = vector.multi_reduction <add>, %79, %cst_26 [1] : vector<8x128xf32> to vector<8xf32>
    %81 = vector.shape_cast %80 : vector<8xf32> to vector<8x1xf32>
    %82 = tpu.reciprocal %81 {approx = true} : vector<8x1xf32> -> vector<8x1xf32>
    %83 = vector.broadcast %82 : vector<8x1xf32> to vector<8x128xf32>
    %84 = arith.mulf %79, %83 : vector<8x128xf32>
    %85 = vector.broadcast %76 : vector<8x1xf32> to vector<8x128xf32>
    %86 = arith.subf %74, %85 : vector<8x128xf32>
    %87 = math.log %81 : vector<8x1xf32>
    %88 = vector.broadcast %87 : vector<8x1xf32> to vector<8x128xf32>
    %89 = arith.subf %86, %88 : vector<8x128xf32>
    %90 = arith.mulf %50, %89 : vector<8x128xf32>
    %cst_27 = arith.constant dense<0.000000e+00> : vector<8xf32>
    %91 = vector.multi_reduction <add>, %90, %cst_27 [1] : vector<8x128xf32> to vector<8xf32>
    %92 = vector.shape_cast %91 : vector<8xf32> to vector<8x1xf32>
    %cst_28 = arith.constant 0.000000e+00 : f32
    %93 = vector.broadcast %cst_28 : f32 to vector<8x1xf32>
    %94 = arith.subf %93, %92 : vector<8x1xf32>
    %95 = vector.shape_cast %72 : vector<8x1xf32> to vector<1x8x1xf32>
    %cst_29 = arith.constant dense<0.000000e+00> : vector<1xf32>
    %96 = vector.multi_reduction <add>, %95, %cst_29 [1, 2] : vector<1x8x1xf32> to vector<1xf32>
    %97 = vector.shape_cast %96 : vector<1xf32> to vector<1x1x1xf32>
    %98 = vector.extract %97[0, 0, 0] : f32 from vector<1x1x1xf32>
    %99 = vector.shape_cast %94 : vector<8x1xf32> to vector<1x8x1xf32>
    %cst_30 = arith.constant dense<0.000000e+00> : vector<1xf32>
    %100 = vector.multi_reduction <add>, %99, %cst_30 [1, 2] : vector<1x8x1xf32> to vector<1xf32>
    %101 = vector.shape_cast %100 : vector<1xf32> to vector<1x1x1xf32>
    %102 = vector.extract %101[0, 0, 0] : f32 from vector<1x1x1xf32>
    %cst_31 = arith.constant 1.000000e+00 : f32
    %103 = vector.broadcast %cst_31 : f32 to vector<8x1xf32>
    %104 = arith.mulf %103, %23 : vector<8x1xf32>
    %105 = arith.subf %62, %50 : vector<8x128xf32>
    %106 = vector.broadcast %104 : vector<8x1xf32> to vector<8x128xf32>
    %107 = arith.mulf %106, %105 : vector<8x128xf32>
    %cst_32 = arith.constant -1.000000e+00 : f32
    %108 = vector.broadcast %cst_32 : f32 to vector<8x1xf32>
    %109 = arith.mulf %108, %23 : vector<8x1xf32>
    %110 = arith.subf %84, %50 : vector<8x128xf32>
    %111 = vector.broadcast %109 : vector<8x1xf32> to vector<8x128xf32>
    %112 = arith.mulf %111, %110 : vector<8x128xf32>
    %113 = vector.extract_strided_slice %34 {offsets = [0, 0], sizes = [8, 128], strides = [1, 1]} : vector<8x256xf32> to vector<8x128xf32>
    %114 = arith.mulf %112, %113 : vector<8x128xf32>
    %115 = vector.shape_cast %114 : vector<8x128xf32> to vector<1x8x128xf32>
    %cst_33 = arith.constant dense<0.000000e+00> : vector<1xf32>
    %116 = vector.multi_reduction <add>, %115, %cst_33 [1, 2] : vector<1x8x128xf32> to vector<1xf32>
    %117 = vector.shape_cast %116 : vector<1xf32> to vector<1x1x1xf32>
    %118 = vector.extract %117[0, 0, 0] : f32 from vector<1x1x1xf32>
    %119 = vector.extract_strided_slice %34 {offsets = [0, 128], sizes = [8, 128], strides = [1, 1]} : vector<8x256xf32> to vector<8x128xf32>
    %120 = arith.mulf %107, %119 : vector<8x128xf32>
    %121 = vector.shape_cast %120 : vector<8x128xf32> to vector<1x8x128xf32>
    %cst_34 = arith.constant dense<0.000000e+00> : vector<1xf32>
    %122 = vector.multi_reduction <add>, %121, %cst_34 [1, 2] : vector<1x8x128xf32> to vector<1xf32>
    %123 = vector.shape_cast %122 : vector<1xf32> to vector<1x1x1xf32>
    %124 = vector.extract %123[0, 0, 0] : f32 from vector<1x1x1xf32>
    %125 = arith.addf %118, %124 : f32
    %126 = vector.extract_strided_slice %37 {offsets = [0, 0], sizes = [8, 128], strides = [1, 1]} : vector<8x256xf32> to vector<8x128xf32>
    %127 = arith.mulf %112, %126 : vector<8x128xf32>
    %128 = vector.shape_cast %127 : vector<8x128xf32> to vector<1x8x128xf32>
    %cst_35 = arith.constant dense<0.000000e+00> : vector<1xf32>
    %129 = vector.multi_reduction <add>, %128, %cst_35 [1, 2] : vector<1x8x128xf32> to vector<1xf32>
    %130 = vector.shape_cast %129 : vector<1xf32> to vector<1x1x1xf32>
    %131 = vector.extract %130[0, 0, 0] : f32 from vector<1x1x1xf32>
    %132 = vector.extract_strided_slice %37 {offsets = [0, 128], sizes = [8, 128], strides = [1, 1]} : vector<8x256xf32> to vector<8x128xf32>
    %133 = arith.mulf %107, %132 : vector<8x128xf32>
    %134 = vector.shape_cast %133 : vector<8x128xf32> to vector<1x8x128xf32>
    %cst_36 = arith.constant dense<0.000000e+00> : vector<1xf32>
    %135 = vector.multi_reduction <add>, %134, %cst_36 [1, 2] : vector<1x8x128xf32> to vector<1xf32>
    %136 = vector.shape_cast %135 : vector<1xf32> to vector<1x1x1xf32>
    %137 = vector.extract %136[0, 0, 0] : f32 from vector<1x1x1xf32>
    %138 = arith.addf %131, %137 : f32
    %139 = tpu.iota {dimensions = array<i32: 1>} : vector<8x128xi32>
    %c0_i32_37 = arith.constant 0 : i32
    %140 = vector.broadcast %c0_i32_37 : i32 to vector<8x128xi32>
    %141 = arith.cmpi eq, %139, %140 : vector<8x128xi32>
    %cst_38 = arith.constant 0.000000e+00 : f32
    %142 = vector.broadcast %98 : f32 to vector<8x128xf32>
    %143 = vector.broadcast %cst_38 : f32 to vector<8x128xf32>
    %144 = arith.select %141, %142, %143 : vector<8x128xi1>, vector<8x128xf32>
    %c1_i32 = arith.constant 1 : i32
    %145 = vector.broadcast %c1_i32 : i32 to vector<8x128xi32>
    %146 = arith.cmpi eq, %139, %145 : vector<8x128xi32>
    %147 = vector.broadcast %102 : f32 to vector<8x128xf32>
    %148 = arith.select %146, %147, %144 : vector<8x128xi1>, vector<8x128xf32>
    %c2_i32 = arith.constant 2 : i32
    %149 = vector.broadcast %c2_i32 : i32 to vector<8x128xi32>
    %150 = arith.cmpi eq, %139, %149 : vector<8x128xi32>
    %151 = vector.broadcast %125 : f32 to vector<8x128xf32>
    %152 = arith.select %150, %151, %148 : vector<8x128xi1>, vector<8x128xf32>
    %c3_i32 = arith.constant 3 : i32
    %153 = vector.broadcast %c3_i32 : i32 to vector<8x128xi32>
    %154 = arith.cmpi eq, %139, %153 : vector<8x128xi32>
    %155 = vector.broadcast %138 : f32 to vector<8x128xf32>
    %156 = arith.select %154, %155, %152 : vector<8x128xi1>, vector<8x128xf32>
    %c0_39 = arith.constant 0 : index
    %c0_40 = arith.constant 0 : index
    %c0_41 = arith.constant 0 : index
    %157 = vector.load %arg6[%c0_39, %c0_40, %c0_41] : memref<1x8x128xf32, #tpu.memory_space<vmem>>, vector<1x8x128xf32>
    %158 = vector.shape_cast %157 : vector<1x8x128xf32> to vector<8x128xf32>
    %159 = vector.shape_cast %156 : vector<8x128xf32> to vector<1x8x128xf32>
    tpu.vector_store %arg6[%c0_39, %c0_40, %c0_41], %159 {strides = array<i32>} : memref<1x8x128xf32, #tpu.memory_space<vmem>>, vector<1x8x128xf32>,
    return
  }
  func.func @transform_0(%arg0: i32) -> i32 {
    %c0_i32 = arith.constant 0 : i32
    %c0_i32_0 = arith.constant 0 : i32
    return %c0_i32 : i32
  }
  func.func @transform_1(%arg0: i32) -> (i32, i32) {
    %c0_i32 = arith.constant 0 : i32
    %c0_i32_0 = arith.constant 0 : i32
    return %arg0, %c0_i32 : i32, i32
  }
  func.func @transform_2(%arg0: i32) -> (i32, i32) {
    %c0_i32 = arith.constant 0 : i32
    %c0_i32_0 = arith.constant 0 : i32
    %c0_i32_1 = arith.constant 0 : i32
    return %c0_i32, %c0_i32_0 : i32, i32
  }
  func.func @transform_3(%arg0: i32) -> (i32, i32) {
    %c0_i32 = arith.constant 0 : i32
    %c0_i32_0 = arith.constant 0 : i32
    return %arg0, %c0_i32 : i32, i32
  }
  func.func @transform_4(%arg0: i32) -> (i32, i32, i32) {
    %c0_i32 = arith.constant 0 : i32
    %c0_i32_0 = arith.constant 0 : i32
    %c0_i32_1 = arith.constant 0 : i32
    return %c0_i32, %arg0, %c0_i32_0 : i32, i32, i32
  }
  func.func @transform_5(%arg0: i32) -> (i32, i32, i32) {
    %c0_i32 = arith.constant 0 : i32
    %c0_i32_0 = arith.constant 0 : i32
    %c0_i32_1 = arith.constant 0 : i32
    return %arg0, %c0_i32, %c0_i32_0 : i32, i32, i32
  }
}

</mosaic_0001>

<llo_original>
// kernel: tpu_custom_call.1
$region0: #{tpu_custom_call.1}
  #allocation0 [shape = 'u32[]', space=smem, size = 0x4, offset = 0x4, fixed_abs, tag = 'smem constant byte address 0x4 - core index']
  #allocation1 [shape = 'u32[144,128]{1,0:T(1,128)}', space=vmem, size = 0x12000, scoped, tag = 'internal scratch']
  %s0 = inlined_call_operand.vmem [shape: f32[2], index: 0, kind: input, shape index: {}]
  %s1 = inlined_call_operand.hbm [shape: f32[8,1024], index: 1, kind: input, shape index: {}]
  %s2 = inlined_call_operand.hbm [shape: bf16[1024,256], index: 2, kind: input, shape index: {}]
  %s3 = inlined_call_operand.vmem [shape: s32[8,1], index: 3, kind: input, shape index: {}]
  %s4 = inlined_call_operand.hbm [shape: f32[2,8,1024], index: 4, kind: output, shape index: {0}]
  %s5 = inlined_call_operand.hbm [shape: f32[1,8,128], index: 5, kind: output, shape index: {1}]
  %6 = xla_tuple %s4, %s5
  %s7 = sld [smem:[#allocation0]]
  $region46: #{tpu_custom_call.1} parent=0
    _
  %s9 = ssub.s32 1, %s7
  %s10 = scalar_select 0, %s9, %s7
  $region1: #{tpu_custom_call.1} parent=0
    #allocation2 [shape = 'u8[512]{0}', space=smem, size = 0x200, scoped, tag = 'input window, operand 0, single buffered']
    #allocation3 [shape = 's32[1]{0}', space=sflag, size = 0x4, scoped, tag = 'scoped memory for tpu_custom_call.1']
    #allocation4 [shape = 's32[1]{0}', space=sflag, size = 0x4, scoped, tag = 'scoped memory for tpu_custom_call.1']
    #allocation5 [shape = 's32[1]{0}', space=sflag, size = 0x4, scoped, tag = 'scoped memory for tpu_custom_call.1']
    #allocation6 [shape = 'u8[32768]{0}', space=vmem, size = 0x8000, scoped, tag = 'input window, operand 1, single buffered']
    #allocation7 [shape = 'u8[524288]{0}', space=vmem, size = 0x80000, scoped, tag = 'input window, operand 2, single buffered']
    #allocation8 [shape = 's32[1]{0}', space=sflag, size = 0x4, scoped, tag = 'scoped memory for tpu_custom_call.1']
    #allocation9 [shape = 'u8[65536]{0}', space=vmem, size = 0x10000, scoped, tag = 'output window, operand 0, single buffered']
    #allocation10 [shape = 'u8[4096]{0}', space=vmem, size = 0x1000, scoped, tag = 'output window, operand 1, single buffered']
    #allocation11 [shape = 's32[1]{0}', space=sflag, size = 0x4, scoped, tag = 'scoped memory for tpu_custom_call.1']
    %11 = vsyncpa [#allocation5], 0
    %12 = vsyncpa [#allocation3], 0
    %13 = vsyncpa [#allocation8], 0
    %14 = vsyncpa [#allocation4], 0
    %15 = vsyncpa [#allocation11], 0
    // Predicated region
    $region2: #{tpu_custom_call.1} parent=1 // pred_check
      _
    $region3: #{tpu_custom_call.1} parent=1 // pred_check_branch
      %17 = sbr.rel (0) target = $region5
    $region4: #{tpu_custom_call.1} parent=1 // pred_region
      %s19 = ssub.s32 16, 16
      %20 = vsyncadd [#allocation5], %s19
      %s22 = sshll.u32 %s0, 4
      %s23 = int_to_ptr.vmem [resolvable:$true] %s22
      %25 = dma.vmem_to_smem %s23, 16, [#allocation2], [#allocation5]
    $region5: #{tpu_custom_call.1} parent=1 // pred_fallthru
      _
    // Predicated region
    $region6: #{tpu_custom_call.1} parent=1 // pred_check
      _
    $region7: #{tpu_custom_call.1} parent=1 // pred_check_branch
      %27 = sbr.rel (0) target = $region9
    $region8: #{tpu_custom_call.1} parent=1 // pred_region
      %s29 = ssub.s32 1024, 1024
      %30 = vsyncadd [#allocation3], %s29
      %s32 = sshll.u32 [#allocation6], 4
      %s33 = int_to_ptr.vmem [resolvable:$true] %s32
      %35 = dma.hbm_to_vmem [thread:$0]  %s1, 1024, %s33, [#allocation3]
    $region9: #{tpu_custom_call.1} parent=1 // pred_fallthru
      _
    // Predicated region
    $region10: #{tpu_custom_call.1} parent=1 // pred_check
      _
    $region11: #{tpu_custom_call.1} parent=1 // pred_check_branch
      %37 = sbr.rel (0) target = $region13
    $region12: #{tpu_custom_call.1} parent=1 // pred_region
      %s39 = ssub.s32 16384, 16384
      %40 = vsyncadd [#allocation8], %s39
      %s41 = sshll.u32 [#allocation7], 4
      %s42 = int_to_ptr.vmem [resolvable:$true] %s41
      %47 = dma.hbm_to_vmem [thread:$0]  %s2, 16384, %s42, [#allocation8], 128, 128, 8
    $region13: #{tpu_custom_call.1} parent=1 // pred_fallthru
      _
    // Predicated region
    $region14: #{tpu_custom_call.1} parent=1 // pred_check
      _
    $region15: #{tpu_custom_call.1} parent=1 // pred_check_branch
      %49 = sbr.rel (0) target = $region17
    $region16: #{tpu_custom_call.1} parent=1 // pred_region
      _
    $region17: #{tpu_custom_call.1} parent=1 // pred_fallthru
      _
    // Predicated region
    $region18: #{tpu_custom_call.1} parent=1 // pred_check
      _
    $region19: #{tpu_custom_call.1} parent=1 // pred_check_branch
      %51 = sbr.rel (0) target = $region21
    $region20: #{tpu_custom_call.1} parent=1 // pred_region
      %52 = dma.done [#allocation5], 16
    $region21: #{tpu_custom_call.1} parent=1 // pred_fallthru
      _
    // Predicated region
    $region22: #{tpu_custom_call.1} parent=1 // pred_check
      _
    $region23: #{tpu_custom_call.1} parent=1 // pred_check_branch
      %54 = sbr.rel (0) target = $region25
    $region24: #{tpu_custom_call.1} parent=1 // pred_region
      %55 = dma.done [#allocation3], 1024
    $region25: #{tpu_custom_call.1} parent=1 // pred_fallthru
      _
    // Predicated region
    $region26: #{tpu_custom_call.1} parent=1 // pred_check
      _
    $region27: #{tpu_custom_call.1} parent=1 // pred_check_branch
      %57 = sbr.rel (0) target = $region29
    $region28: #{tpu_custom_call.1} parent=1 // pred_region
      %58 = dma.done [#allocation8], 16384
    $region29: #{tpu_custom_call.1} parent=1 // pred_fallthru
      _
    %59 = sfence
    %s60 = sld [smem:[#allocation2]]
    %s61 = sld [smem:[#allocation2 + $0x1]]
    %v62 = vld [vmem:[#allocation6] sm:$0xff]
    %v63 = vld [vmem:[#allocation6 + $0x8] sm:$0xff]
    %v64 = vld [vmem:[#allocation6 + $0x10] sm:$0xff]
    %v65 = vld [vmem:[#allocation6 + $0x18] sm:$0xff]
    %v66 = vld [vmem:[#allocation6 + $0x20] sm:$0xff]
    %v67 = vld [vmem:[#allocation6 + $0x28] sm:$0xff]
    %v68 = vld [vmem:[#allocation6 + $0x30] sm:$0xff]
    %v69 = vld [vmem:[#allocation6 + $0x38] sm:$0xff]
    %s70 = sadd.f32 %s61, 1.0
    %v71 = vstv %s70
    %v72 = vmul.f32 %v62, %v71
    %v73 = vmul.f32 %v63, %v71
    %v74 = vmul.f32 %v64, %v71
    %v75 = vmul.f32 %v65, %v71
    %v76 = vmul.f32 %v66, %v71
    %v77 = vmul.f32 %v67, %v71
    %v78 = vmul.f32 %v68, %v71
    %v79 = vmul.f32 %v69, %v71
    %v80 = vstv %s60
    %v81 = vadd.f32 %v72, %v80
    %v82 = vadd.f32 %v73, %v80
    %v83 = vadd.f32 %v74, %v80
    %v84 = vadd.f32 %v75, %v80
    %v85 = vadd.f32 %v76, %v80
    %v86 = vadd.f32 %v77, %v80
    %v87 = vadd.f32 %v78, %v80
    %v88 = vadd.f32 %v79, %v80
    %v89 = vmax.f32 %v81, 0.0
    %v90 = vmax.f32 %v82, 0.0
    %v91 = vmax.f32 %v83, 0.0
    %v92 = vmax.f32 %v84, 0.0
    %v93 = vmax.f32 %v85, 0.0
    %v94 = vmax.f32 %v86, 0.0
    %v95 = vmax.f32 %v87, 0.0
    %v96 = vmax.f32 %v88, 0.0
    %v97 = vmin.f32 %v89, 1.0
    %v98 = vmin.f32 %v90, 1.0
    %v99 = vmin.f32 %v91, 1.0
    %v100 = vmin.f32 %v92, 1.0
    %v101 = vmin.f32 %v93, 1.0
    %v102 = vmin.f32 %v94, 1.0
    %v103 = vmin.f32 %v95, 1.0
    %v104 = vmin.f32 %v96, 1.0
    %105 = vst [vmem:[#allocation9] sm:$0xff] %v97
    %106 = vst [vmem:[#allocation9 + $0x8] sm:$0xff] %v98
    %107 = vst [vmem:[#allocation9 + $0x10] sm:$0xff] %v99
    %108 = vst [vmem:[#allocation9 + $0x18] sm:$0xff] %v100
    %109 = vst [vmem:[#allocation9 + $0x20] sm:$0xff] %v101
    %110 = vst [vmem:[#allocation9 + $0x28] sm:$0xff] %v102
    %111 = vst [vmem:[#allocation9 + $0x30] sm:$0xff] %v103
    %112 = vst [vmem:[#allocation9 + $0x38] sm:$0xff] %v104
    %s113 = scalar_lea.vmem [#allocation9], 64
    %114 = vst [vmem:[%s113] sm:$0xff] %v62
    %115 = vst [vmem:[%s113 + $0x8] sm:$0xff] %v63
    %116 = vst [vmem:[%s113 + $0x10] sm:$0xff] %v64
    %117 = vst [vmem:[%s113 + $0x18] sm:$0xff] %v65
    %118 = vst [vmem:[%s113 + $0x20] sm:$0xff] %v66
    %119 = vst [vmem:[%s113 + $0x28] sm:$0xff] %v67
    %120 = vst [vmem:[%s113 + $0x30] sm:$0xff] %v68
    %121 = vst [vmem:[%s113 + $0x38] sm:$0xff] %v69
    %v122 = vld [vmem:[#allocation7] sm:$0xff]
    %v123 = vld [vmem:[#allocation7 + $0x8] sm:$0xff]
    %v124 = vld [vmem:[#allocation7 + $0x10] sm:$0xff]
    %v125 = vld [vmem:[#allocation7 + $0x18] sm:$0xff]
    %v126 = vld [vmem:[#allocation7 + $0x20] sm:$0xff]
    %v127 = vld [vmem:[#allocation7 + $0x28] sm:$0xff]
    %v128 = vld [vmem:[#allocation7 + $0x30] sm:$0xff]
    %v129 = vld [vmem:[#allocation7 + $0x38] sm:$0xff]
    %v130 = vld [vmem:[#allocation7 + $0x40] sm:$0xff]
    %v131 = vld [vmem:[#allocation7 + $0x48] sm:$0xff]
    %v132 = vld [vmem:[#allocation7 + $0x50] sm:$0xff]
    %v133 = vld [vmem:[#allocation7 + $0x58] sm:$0xff]
    %v134 = vld [vmem:[#allocation7 + $0x60] sm:$0xff]
    %v135 = vld [vmem:[#allocation7 + $0x68] sm:$0xff]
    %v136 = vld [vmem:[#allocation7 + $0x70] sm:$0xff]
    %v137 = vld [vmem:[#allocation7 + $0x78] sm:$0xff]
    %v138 = vld [vmem:[#allocation7 + $0x80] sm:$0xff]
    %v139 = vld [vmem:[#allocation7 + $0x88] sm:$0xff]
    %v140 = vld [vmem:[#allocation7 + $0x90] sm:$0xff]
    %v141 = vld [vmem:[#allocation7 + $0x98] sm:$0xff]
    %v142 = vld [vmem:[#allocation7 + $0xa0] sm:$0xff]
    %v143 = vld [vmem:[#allocation7 + $0xa8] sm:$0xff]
    %v144 = vld [vmem:[#allocation7 + $0xb0] sm:$0xff]
    %v145 = vld [vmem:[#allocation7 + $0xb8] sm:$0xff]
    %v146 = vld [vmem:[#allocation7 + $0xc0] sm:$0xff]
    %v147 = vld [vmem:[#allocation7 + $0xc8] sm:$0xff]
    %v148 = vld [vmem:[#allocation7 + $0xd0] sm:$0xff]
    %v149 = vld [vmem:[#allocation7 + $0xd8] sm:$0xff]
    %v150 = vld [vmem:[#allocation7 + $0xe0] sm:$0xff]
    %v151 = vld [vmem:[#allocation7 + $0xe8] sm:$0xff]
    %v152 = vld [vmem:[#allocation7 + $0xf0] sm:$0xff]
    %v153 = vld [vmem:[#allocation7 + $0xf8] sm:$0xff]
    %v154 = vld [vmem:[#allocation7 + $0x100] sm:$0xff]
    %v155 = vld [vmem:[#allocation7 + $0x108] sm:$0xff]
    %v156 = vld [vmem:[#allocation7 + $0x110] sm:$0xff]
    %v157 = vld [vmem:[#allocation7 + $0x118] sm:$0xff]
    %v158 = vld [vmem:[#allocation7 + $0x120] sm:$0xff]
    %v159 = vld [vmem:[#allocation7 + $0x128] sm:$0xff]
    %v160 = vld [vmem:[#allocation7 + $0x130] sm:$0xff]
    %v161 = vld [vmem:[#allocation7 + $0x138] sm:$0xff]
    %v162 = vld [vmem:[#allocation7 + $0x140] sm:$0xff]
    %v163 = vld [vmem:[#allocation7 + $0x148] sm:$0xff]
    %v164 = vld [vmem:[#allocation7 + $0x150] sm:$0xff]
    %v165 = vld [vmem:[#allocation7 + $0x158] sm:$0xff]
    %v166 = vld [vmem:[#allocation7 + $0x160] sm:$0xff]
    %v167 = vld [vmem:[#allocation7 + $0x168] sm:$0xff]
    %v168 = vld [vmem:[#allocation7 + $0x170] sm:$0xff]
    %v169 = vld [vmem:[#allocation7 + $0x178] sm:$0xff]
    %v170 = vld [vmem:[#allocation7 + $0x180] sm:$0xff]
    %v171 = vld [vmem:[#allocation7 + $0x188] sm:$0xff]
    %v172 = vld [vmem:[#allocation7 + $0x190] sm:$0xff]
    %v173 = vld [vmem:[#allocation7 + $0x198] sm:$0xff]
    %v174 = vld [vmem:[#allocation7 + $0x1a0] sm:$0xff]
    %v175 = vld [vmem:[#allocation7 + $0x1a8] sm:$0xff]
    %v176 = vld [vmem:[#allocation7 + $0x1b0] sm:$0xff]
    %v177 = vld [vmem:[#allocation7 + $0x1b8] sm:$0xff]
    %v178 = vld [vmem:[#allocation7 + $0x1c0] sm:$0xff]
    %v179 = vld [vmem:[#allocation7 + $0x1c8] sm:$0xff]
    %v180 = vld [vmem:[#allocation7 + $0x1d0] sm:$0xff]
    %v181 = vld [vmem:[#allocation7 + $0x1d8] sm:$0xff]
    %v182 = vld [vmem:[#allocation7 + $0x1e0] sm:$0xff]
    %v183 = vld [vmem:[#allocation7 + $0x1e8] sm:$0xff]
    %v184 = vld [vmem:[#allocation7 + $0x1f0] sm:$0xff]
    %v185 = vld [vmem:[#allocation7 + $0x1f8] sm:$0xff]
    %v186 = vld [vmem:[#allocation7 + $0x200] sm:$0xff]
    %v187 = vld [vmem:[#allocation7 + $0x208] sm:$0xff]
    %v188 = vld [vmem:[#allocation7 + $0x210] sm:$0xff]
    %v189 = vld [vmem:[#allocation7 + $0x218] sm:$0xff]
    %v190 = vld [vmem:[#allocation7 + $0x220] sm:$0xff]
    %v191 = vld [vmem:[#allocation7 + $0x228] sm:$0xff]
    %v192 = vld [vmem:[#allocation7 + $0x230] sm:$0xff]
    %v193 = vld [vmem:[#allocation7 + $0x238] sm:$0xff]
    %v194 = vld [vmem:[#allocation7 + $0x240] sm:$0xff]
    %v195 = vld [vmem:[#allocation7 + $0x248] sm:$0xff]
    %v196 = vld [vmem:[#allocation7 + $0x250] sm:$0xff]
    %v197 = vld [vmem:[#allocation7 + $0x258] sm:$0xff]
    %v198 = vld [vmem:[#allocation7 + $0x260] sm:$0xff]
    %v199 = vld [vmem:[#allocation7 + $0x268] sm:$0xff]
    %v200 = vld [vmem:[#allocation7 + $0x270] sm:$0xff]
    %v201 = vld [vmem:[#allocation7 + $0x278] sm:$0xff]
    %v202 = vld [vmem:[#allocation7 + $0x280] sm:$0xff]
    %v203 = vld [vmem:[#allocation7 + $0x288] sm:$0xff]
    %v204 = vld [vmem:[#allocation7 + $0x290] sm:$0xff]
    %v205 = vld [vmem:[#allocation7 + $0x298] sm:$0xff]
    %v206 = vld [vmem:[#allocation7 + $0x2a0] sm:$0xff]
    %v207 = vld [vmem:[#allocation7 + $0x2a8] sm:$0xff]
    %v208 = vld [vmem:[#allocation7 + $0x2b0] sm:$0xff]
    %v209 = vld [vmem:[#allocation7 + $0x2b8] sm:$0xff]
    %v210 = vld [vmem:[#allocation7 + $0x2c0] sm:$0xff]
    %v211 = vld [vmem:[#allocation7 + $0x2c8] sm:$0xff]
    %v212 = vld [vmem:[#allocation7 + $0x2d0] sm:$0xff]
    %v213 = vld [vmem:[#allocation7 + $0x2d8] sm:$0xff]
    %v214 = vld [vmem:[#allocation7 + $0x2e0] sm:$0xff]
    %v215 = vld [vmem:[#allocation7 + $0x2e8] sm:$0xff]
    %v216 = vld [vmem:[#allocation7 + $0x2f0] sm:$0xff]
    %v217 = vld [vmem:[#allocation7 + $0x2f8] sm:$0xff]
    %v218 = vld [vmem:[#allocation7 + $0x300] sm:$0xff]
    %v219 = vld [vmem:[#allocation7 + $0x308] sm:$0xff]
    %v220 = vld [vmem:[#allocation7 + $0x310] sm:$0xff]
    %v221 = vld [vmem:[#allocation7 + $0x318] sm:$0xff]
    %v222 = vld [vmem:[#allocation7 + $0x320] sm:$0xff]
    %v223 = vld [vmem:[#allocation7 + $0x328] sm:$0xff]
    %v224 = vld [vmem:[#allocation7 + $0x330] sm:$0xff]
    %v225 = vld [vmem:[#allocation7 + $0x338] sm:$0xff]
    %v226 = vld [vmem:[#allocation7 + $0x340] sm:$0xff]
    %v227 = vld [vmem:[#allocation7 + $0x348] sm:$0xff]
    %v228 = vld [vmem:[#allocation7 + $0x350] sm:$0xff]
    %v229 = vld [vmem:[#allocation7 + $0x358] sm:$0xff]
    %v230 = vld [vmem:[#allocation7 + $0x360] sm:$0xff]
    %v231 = vld [vmem:[#allocation7 + $0x368] sm:$0xff]
    %v232 = vld [vmem:[#allocation7 + $0x370] sm:$0xff]
    %v233 = vld [vmem:[#allocation7 + $0x378] sm:$0xff]
    %v234 = vld [vmem:[#allocation7 + $0x380] sm:$0xff]
    %v235 = vld [vmem:[#allocation7 + $0x388] sm:$0xff]
    %v236 = vld [vmem:[#allocation7 + $0x390] sm:$0xff]
    %v237 = vld [vmem:[#allocation7 + $0x398] sm:$0xff]
    %v238 = vld [vmem:[#allocation7 + $0x3a0] sm:$0xff]
    %v239 = vld [vmem:[#allocation7 + $0x3a8] sm:$0xff]
    %v240 = vld [vmem:[#allocation7 + $0x3b0] sm:$0xff]
    %v241 = vld [vmem:[#allocation7 + $0x3b8] sm:$0xff]
    %v242 = vld [vmem:[#allocation7 + $0x3c0] sm:$0xff]
    %v243 = vld [vmem:[#allocation7 + $0x3c8] sm:$0xff]
    %v244 = vld [vmem:[#allocation7 + $0x3d0] sm:$0xff]
    %v245 = vld [vmem:[#allocation7 + $0x3d8] sm:$0xff]
    %v246 = vld [vmem:[#allocation7 + $0x3e0] sm:$0xff]
    %v247 = vld [vmem:[#allocation7 + $0x3e8] sm:$0xff]
    %v248 = vld [vmem:[#allocation7 + $0x3f0] sm:$0xff]
    %v249 = vld [vmem:[#allocation7 + $0x3f8] sm:$0xff]
    %v250 = vld [vmem:[%s3] sm:$0xff]
    %vm251 = vcmp.ge.s32.totalorder %v250, 0
    %v252 = vsel %vm251, 1, 0
    %v253 = vcvt.s32.f32 %v252
    %vm254 = vcmp.ge.f32.partialorder %v81, 0.0
    %vm255 = vcmp.ge.f32.partialorder %v82, 0.0
    %vm256 = vcmp.ge.f32.partialorder %v83, 0.0
    %vm257 = vcmp.ge.f32.partialorder %v84, 0.0
    %vm258 = vcmp.ge.f32.partialorder %v85, 0.0
    %vm259 = vcmp.ge.f32.partialorder %v86, 0.0
    %vm260 = vcmp.ge.f32.partialorder %v87, 0.0
    %vm261 = vcmp.ge.f32.partialorder %v88, 0.0
    %vm262 = vcmp.le.f32.partialorder %v81, 1.0
    %vm263 = vcmp.le.f32.partialorder %v82, 1.0
    %vm264 = vcmp.le.f32.partialorder %v83, 1.0
    %vm265 = vcmp.le.f32.partialorder %v84, 1.0
    %vm266 = vcmp.le.f32.partialorder %v85, 1.0
    %vm267 = vcmp.le.f32.partialorder %v86, 1.0
    %vm268 = vcmp.le.f32.partialorder %v87, 1.0
    %vm269 = vcmp.le.f32.partialorder %v88, 1.0
    %vm270 = vmand %vm254, %vm262
    %vm271 = vmand %vm255, %vm263
    %vm272 = vmand %vm256, %vm264
    %vm273 = vmand %vm257, %vm265
    %vm274 = vmand %vm258, %vm266
    %vm275 = vmand %vm259, %vm267
    %vm276 = vmand %vm260, %vm268
    %vm277 = vmand %vm261, %vm269
    %v278 = vsel %vm270, 1, 0
    %v279 = vsel %vm271, 1, 0
    %v280 = vsel %vm272, 1, 0
    %v281 = vsel %vm273, 1, 0
    %v282 = vsel %vm274, 1, 0
    %v283 = vsel %vm275, 1, 0
    %v284 = vsel %vm276, 1, 0
    %v285 = vsel %vm277, 1, 0
    %v286 = vcvt.s32.f32 %v278
    %v287 = vcvt.s32.f32 %v279
    %v288 = vcvt.s32.f32 %v280
    %v289 = vcvt.s32.f32 %v281
    %v290 = vcvt.s32.f32 %v282
    %v291 = vcvt.s32.f32 %v283
    %v292 = vcvt.s32.f32 %v284
    %v293 = vcvt.s32.f32 %v285
    %v294 = vpack.c.bf16 %v97, %v97
    %v295 = vpack.c.bf16 %v98, %v98
    %v296 = vpack.c.bf16 %v99, %v99
    %v297 = vpack.c.bf16 %v100, %v100
    %v298 = vpack.c.bf16 %v101, %v101
    %v299 = vpack.c.bf16 %v102, %v102
    %v300 = vpack.c.bf16 %v103, %v103
    %v301 = vpack.c.bf16 %v104, %v104
    %v430 = vunpack.c.l.b16 %v122
    %v431 = vunpack.c.h.b16 %v122
    %v432 = vunpack.c.l.b16 %v123
    %v433 = vunpack.c.h.b16 %v123
    %v434 = vunpack.c.l.b16 %v124
    %v435 = vunpack.c.h.b16 %v124
    %v436 = vunpack.c.l.b16 %v125
    %v437 = vunpack.c.h.b16 %v125
    %v438 = vunpack.c.l.b16 %v126
    %v439 = vunpack.c.h.b16 %v126
    %v440 = vunpack.c.l.b16 %v127
    %v441 = vunpack.c.h.b16 %v127
    %v442 = vunpack.c.l.b16 %v128
    %v443 = vunpack.c.h.b16 %v128
    %v444 = vunpack.c.l.b16 %v129
    %v445 = vunpack.c.h.b16 %v129
    %v446 = vunpack.c.l.b16 %v130
    %v447 = vunpack.c.h.b16 %v130
    %v448 = vunpack.c.l.b16 %v131
    %v449 = vunpack.c.h.b16 %v131
    %v450 = vunpack.c.l.b16 %v132
    %v451 = vunpack.c.h.b16 %v132
    %v452 = vunpack.c.l.b16 %v133
    %v453 = vunpack.c.h.b16 %v133
    %v454 = vunpack.c.l.b16 %v134
    %v455 = vunpack.c.h.b16 %v134
    %v456 = vunpack.c.l.b16 %v135
    %v457 = vunpack.c.h.b16 %v135
    %v458 = vunpack.c.l.b16 %v136
    %v459 = vunpack.c.h.b16 %v136
    %v460 = vunpack.c.l.b16 %v137
    %v461 = vunpack.c.h.b16 %v137
    %v462 = vunpack.c.l.b16 %v138
    %v463 = vunpack.c.h.b16 %v138
    %v464 = vunpack.c.l.b16 %v139
    %v465 = vunpack.c.h.b16 %v139
    %v466 = vunpack.c.l.b16 %v140
    %v467 = vunpack.c.h.b16 %v140
    %v468 = vunpack.c.l.b16 %v141
    %v469 = vunpack.c.h.b16 %v141
    %v470 = vunpack.c.l.b16 %v142
    %v471 = vunpack.c.h.b16 %v142
    %v472 = vunpack.c.l.b16 %v143
    %v473 = vunpack.c.h.b16 %v143
    %v474 = vunpack.c.l.b16 %v144
    %v475 = vunpack.c.h.b16 %v144
    %v476 = vunpack.c.l.b16 %v145
    %v477 = vunpack.c.h.b16 %v145
    %v478 = vunpack.c.l.b16 %v146
    %v479 = vunpack.c.h.b16 %v146
    %v480 = vunpack.c.l.b16 %v147
    %v481 = vunpack.c.h.b16 %v147
    %v482 = vunpack.c.l.b16 %v148
    %v483 = vunpack.c.h.b16 %v148
    %v484 = vunpack.c.l.b16 %v149
    %v485 = vunpack.c.h.b16 %v149
    %v486 = vunpack.c.l.b16 %v150
    %v487 = vunpack.c.h.b16 %v150
    %v488 = vunpack.c.l.b16 %v151
    %v489 = vunpack.c.h.b16 %v151
    %v490 = vunpack.c.l.b16 %v152
    %v491 = vunpack.c.h.b16 %v152
    %v492 = vunpack.c.l.b16 %v153
    %v493 = vunpack.c.h.b16 %v153
    %v494 = vunpack.c.l.b16 %v154
    %v495 = vunpack.c.h.b16 %v154
    %v496 = vunpack.c.l.b16 %v155
    %v497 = vunpack.c.h.b16 %v155
    %v498 = vunpack.c.l.b16 %v156
    %v499 = vunpack.c.h.b16 %v156
    %v500 = vunpack.c.l.b16 %v157
    %v501 = vunpack.c.h.b16 %v157
    %v502 = vunpack.c.l.b16 %v158
    %v503 = vunpack.c.h.b16 %v158
    %v504 = vunpack.c.l.b16 %v159
    %v505 = vunpack.c.h.b16 %v159
    %v506 = vunpack.c.l.b16 %v160
    %v507 = vunpack.c.h.b16 %v160
    %v508 = vunpack.c.l.b16 %v161
    %v509 = vunpack.c.h.b16 %v161
    %v510 = vunpack.c.l.b16 %v162
    %v511 = vunpack.c.h.b16 %v162
    %v512 = vunpack.c.l.b16 %v163
    %v513 = vunpack.c.h.b16 %v163
    %v514 = vunpack.c.l.b16 %v164
    %v515 = vunpack.c.h.b16 %v164
    %v516 = vunpack.c.l.b16 %v165
    %v517 = vunpack.c.h.b16 %v165
    %v518 = vunpack.c.l.b16 %v166
    %v519 = vunpack.c.h.b16 %v166
    %v520 = vunpack.c.l.b16 %v167
    %v521 = vunpack.c.h.b16 %v167
    %v522 = vunpack.c.l.b16 %v168
    %v523 = vunpack.c.h.b16 %v168
    %v524 = vunpack.c.l.b16 %v169
    %v525 = vunpack.c.h.b16 %v169
    %v526 = vunpack.c.l.b16 %v170
    %v527 = vunpack.c.h.b16 %v170
    %v528 = vunpack.c.l.b16 %v171
    %v529 = vunpack.c.h.b16 %v171
    %v530 = vunpack.c.l.b16 %v172
    %v531 = vunpack.c.h.b16 %v172
    %v532 = vunpack.c.l.b16 %v173
    %v533 = vunpack.c.h.b16 %v173
    %v534 = vunpack.c.l.b16 %v174
    %v535 = vunpack.c.h.b16 %v174
    %v536 = vunpack.c.l.b16 %v175
    %v537 = vunpack.c.h.b16 %v175
    %v538 = vunpack.c.l.b16 %v176
    %v539 = vunpack.c.h.b16 %v176
    %v540 = vunpack.c.l.b16 %v177
    %v541 = vunpack.c.h.b16 %v177
    %v542 = vunpack.c.l.b16 %v178
    %v543 = vunpack.c.h.b16 %v178
    %v544 = vunpack.c.l.b16 %v179
    %v545 = vunpack.c.h.b16 %v179
    %v546 = vunpack.c.l.b16 %v180
    %v547 = vunpack.c.h.b16 %v180
    %v548 = vunpack.c.l.b16 %v181
    %v549 = vunpack.c.h.b16 %v181
    %v550 = vunpack.c.l.b16 %v182
    %v551 = vunpack.c.h.b16 %v182
    %v552 = vunpack.c.l.b16 %v183
    %v553 = vunpack.c.h.b16 %v183
    %v554 = vunpack.c.l.b16 %v184
    %v555 = vunpack.c.h.b16 %v184
    %v556 = vunpack.c.l.b16 %v185
    %v557 = vunpack.c.h.b16 %v185
    %v558 = vunpack.c.l.b16 %v186
    %v559 = vunpack.c.h.b16 %v186
    %v560 = vunpack.c.l.b16 %v187
    %v561 = vunpack.c.h.b16 %v187
    %v562 = vunpack.c.l.b16 %v188
    %v563 = vunpack.c.h.b16 %v188
    %v564 = vunpack.c.l.b16 %v189
    %v565 = vunpack.c.h.b16 %v189
    %v566 = vunpack.c.l.b16 %v190
    %v567 = vunpack.c.h.b16 %v190
    %v568 = vunpack.c.l.b16 %v191
    %v569 = vunpack.c.h.b16 %v191
    %v570 = vunpack.c.l.b16 %v192
    %v571 = vunpack.c.h.b16 %v192
    %v572 = vunpack.c.l.b16 %v193
    %v573 = vunpack.c.h.b16 %v193
    %v574 = vunpack.c.l.b16 %v194
    %v575 = vunpack.c.h.b16 %v194
    %v576 = vunpack.c.l.b16 %v195
    %v577 = vunpack.c.h.b16 %v195
    %v578 = vunpack.c.l.b16 %v196
    %v579 = vunpack.c.h.b16 %v196
    %v580 = vunpack.c.l.b16 %v197
    %v581 = vunpack.c.h.b16 %v197
    %v582 = vunpack.c.l.b16 %v198
    %v583 = vunpack.c.h.b16 %v198
    %v584 = vunpack.c.l.b16 %v199
    %v585 = vunpack.c.h.b16 %v199
    %v586 = vunpack.c.l.b16 %v200
    %v587 = vunpack.c.h.b16 %v200
    %v588 = vunpack.c.l.b16 %v201
    %v589 = vunpack.c.h.b16 %v201
    %v590 = vunpack.c.l.b16 %v202
    %v591 = vunpack.c.h.b16 %v202
    %v592 = vunpack.c.l.b16 %v203
    %v593 = vunpack.c.h.b16 %v203
    %v594 = vunpack.c.l.b16 %v204
    %v595 = vunpack.c.h.b16 %v204
    %v596 = vunpack.c.l.b16 %v205
    %v597 = vunpack.c.h.b16 %v205
    %v598 = vunpack.c.l.b16 %v206
    %v599 = vunpack.c.h.b16 %v206
    %v600 = vunpack.c.l.b16 %v207
    %v601 = vunpack.c.h.b16 %v207
    %v602 = vunpack.c.l.b16 %v208
    %v603 = vunpack.c.h.b16 %v208
    %v604 = vunpack.c.l.b16 %v209
    %v605 = vunpack.c.h.b16 %v209
    %v606 = vunpack.c.l.b16 %v210
    %v607 = vunpack.c.h.b16 %v210
    %v608 = vunpack.c.l.b16 %v211
    %v609 = vunpack.c.h.b16 %v211
    %v610 = vunpack.c.l.b16 %v212
    %v611 = vunpack.c.h.b16 %v212
    %v612 = vunpack.c.l.b16 %v213
    %v613 = vunpack.c.h.b16 %v213
    %v614 = vunpack.c.l.b16 %v214
    %v615 = vunpack.c.h.b16 %v214
    %v616 = vunpack.c.l.b16 %v215
    %v617 = vunpack.c.h.b16 %v215
    %v618 = vunpack.c.l.b16 %v216
    %v619 = vunpack.c.h.b16 %v216
    %v620 = vunpack.c.l.b16 %v217
    %v621 = vunpack.c.h.b16 %v217
    %v622 = vunpack.c.l.b16 %v218
    %v623 = vunpack.c.h.b16 %v218
    %v624 = vunpack.c.l.b16 %v219
    %v625 = vunpack.c.h.b16 %v219
    %v626 = vunpack.c.l.b16 %v220
    %v627 = vunpack.c.h.b16 %v220
    %v628 = vunpack.c.l.b16 %v221
    %v629 = vunpack.c.h.b16 %v221
    %v630 = vunpack.c.l.b16 %v222
    %v631 = vunpack.c.h.b16 %v222
    %v632 = vunpack.c.l.b16 %v223
    %v633 = vunpack.c.h.b16 %v223
    %v634 = vunpack.c.l.b16 %v224
    %v635 = vunpack.c.h.b16 %v224
    %v636 = vunpack.c.l.b16 %v225
    %v637 = vunpack.c.h.b16 %v225
    %v638 = vunpack.c.l.b16 %v226
    %v639 = vunpack.c.h.b16 %v226
    %v640 = vunpack.c.l.b16 %v227
    %v641 = vunpack.c.h.b16 %v227
    %v642 = vunpack.c.l.b16 %v228
    %v643 = vunpack.c.h.b16 %v228
    %v644 = vunpack.c.l.b16 %v229
    %v645 = vunpack.c.h.b16 %v229
    %v646 = vunpack.c.l.b16 %v230
    %v647 = vunpack.c.h.b16 %v230
    %v648 = vunpack.c.l.b16 %v231
    %v649 = vunpack.c.h.b16 %v231
    %v650 = vunpack.c.l.b16 %v232
    %v651 = vunpack.c.h.b16 %v232
    %v652 = vunpack.c.l.b16 %v233
    %v653 = vunpack.c.h.b16 %v233
    %v654 = vunpack.c.l.b16 %v234
    %v655 = vunpack.c.h.b16 %v234
    %v656 = vunpack.c.l.b16 %v235
    %v657 = vunpack.c.h.b16 %v235
    %v658 = vunpack.c.l.b16 %v236
    %v659 = vunpack.c.h.b16 %v236
    %v660 = vunpack.c.l.b16 %v237
    %v661 = vunpack.c.h.b16 %v237
    %v662 = vunpack.c.l.b16 %v238
    %v663 = vunpack.c.h.b16 %v238
    %v664 = vunpack.c.l.b16 %v239
    %v665 = vunpack.c.h.b16 %v239
    %v666 = vunpack.c.l.b16 %v240
    %v667 = vunpack.c.h.b16 %v240
    %v668 = vunpack.c.l.b16 %v241
    %v669 = vunpack.c.h.b16 %v241
    %v670 = vunpack.c.l.b16 %v242
    %v671 = vunpack.c.h.b16 %v242
    %v672 = vunpack.c.l.b16 %v243
    %v673 = vunpack.c.h.b16 %v243
    %v674 = vunpack.c.l.b16 %v244
    %v675 = vunpack.c.h.b16 %v244
    %v676 = vunpack.c.l.b16 %v245
    %v677 = vunpack.c.h.b16 %v245
    %v678 = vunpack.c.l.b16 %v246
    %v679 = vunpack.c.h.b16 %v246
    %v680 = vunpack.c.l.b16 %v247
    %v681 = vunpack.c.h.b16 %v247
    %v682 = vunpack.c.l.b16 %v248
    %v683 = vunpack.c.h.b16 %v248
    %v684 = vunpack.c.l.b16 %v249
    %v685 = vunpack.c.h.b16 %v249
    %v686 = vpack.c.b16 %v432, %v430
    %v687 = vpack.c.b16 %v433, %v431
    %v688 = vpack.c.b16 %v436, %v434
    %v689 = vpack.c.b16 %v437, %v435
    %v690 = vpack.c.b16 %v440, %v438
    %v691 = vpack.c.b16 %v441, %v439
    %v692 = vpack.c.b16 %v444, %v442
    %v693 = vpack.c.b16 %v445, %v443
    %v694 = vpack.c.b16 %v448, %v446
    %v695 = vpack.c.b16 %v449, %v447
    %v696 = vpack.c.b16 %v452, %v450
    %v697 = vpack.c.b16 %v453, %v451
    %v698 = vpack.c.b16 %v456, %v454
    %v699 = vpack.c.b16 %v457, %v455
    %v700 = vpack.c.b16 %v460, %v458
    %v701 = vpack.c.b16 %v461, %v459
    %v702 = vpack.c.b16 %v464, %v462
    %v703 = vpack.c.b16 %v465, %v463
    %v704 = vpack.c.b16 %v468, %v466
    %v705 = vpack.c.b16 %v469, %v467
    %v706 = vpack.c.b16 %v472, %v470
    %v707 = vpack.c.b16 %v473, %v471
    %v708 = vpack.c.b16 %v476, %v474
    %v709 = vpack.c.b16 %v477, %v475
    %v710 = vpack.c.b16 %v480, %v478
    %v711 = vpack.c.b16 %v481, %v479
    %v712 = vpack.c.b16 %v484, %v482
    %v713 = vpack.c.b16 %v485, %v483
    %v714 = vpack.c.b16 %v488, %v486
    %v715 = vpack.c.b16 %v489, %v487
    %v716 = vpack.c.b16 %v492, %v490
    %v717 = vpack.c.b16 %v493, %v491
    %v718 = vpack.c.b16 %v496, %v494
    %v719 = vpack.c.b16 %v497, %v495
    %v720 = vpack.c.b16 %v500, %v498
    %v721 = vpack.c.b16 %v501, %v499
    %v722 = vpack.c.b16 %v504, %v502
    %v723 = vpack.c.b16 %v505, %v503
    %v724 = vpack.c.b16 %v508, %v506
    %v725 = vpack.c.b16 %v509, %v507
    %v726 = vpack.c.b16 %v512, %v510
    %v727 = vpack.c.b16 %v513, %v511
    %v728 = vpack.c.b16 %v516, %v514
    %v729 = vpack.c.b16 %v517, %v515
    %v730 = vpack.c.b16 %v520, %v518
    %v731 = vpack.c.b16 %v521, %v519
    %v732 = vpack.c.b16 %v524, %v522
    %v733 = vpack.c.b16 %v525, %v523
    %v734 = vpack.c.b16 %v528, %v526
    %v735 = vpack.c.b16 %v529, %v527
    %v736 = vpack.c.b16 %v532, %v530
    %v737 = vpack.c.b16 %v533, %v531
    %v738 = vpack.c.b16 %v536, %v534
    %v739 = vpack.c.b16 %v537, %v535
    %v740 = vpack.c.b16 %v540, %v538
    %v741 = vpack.c.b16 %v541, %v539
    %v742 = vpack.c.b16 %v544, %v542
    %v743 = vpack.c.b16 %v545, %v543
    %v744 = vpack.c.b16 %v548, %v546
    %v745 = vpack.c.b16 %v549, %v547
    %v746 = vpack.c.b16 %v552, %v550
    %v747 = vpack.c.b16 %v553, %v551
    %v748 = vpack.c.b16 %v556, %v554
    %v749 = vpack.c.b16 %v557, %v555
    %v750 = vpack.c.b16 %v560, %v558
    %v751 = vpack.c.b16 %v561, %v559
    %v752 = vpack.c.b16 %v564, %v562
    %v753 = vpack.c.b16 %v565, %v563
    %v754 = vpack.c.b16 %v568, %v566
    %v755 = vpack.c.b16 %v569, %v567
    %v756 = vpack.c.b16 %v572, %v570
    %v757 = vpack.c.b16 %v573, %v571
    %v758 = vpack.c.b16 %v576, %v574
    %v759 = vpack.c.b16 %v577, %v575
    %v760 = vpack.c.b16 %v580, %v578
    %v761 = vpack.c.b16 %v581, %v579
    %v762 = vpack.c.b16 %v584, %v582
    %v763 = vpack.c.b16 %v585, %v583
    %v764 = vpack.c.b16 %v588, %v586
    %v765 = vpack.c.b16 %v589, %v587
    %v766 = vpack.c.b16 %v592, %v590
    %v767 = vpack.c.b16 %v593, %v591
    %v768 = vpack.c.b16 %v596, %v594
    %v769 = vpack.c.b16 %v597, %v595
    %v770 = vpack.c.b16 %v600, %v598
    %v771 = vpack.c.b16 %v601, %v599
    %v772 = vpack.c.b16 %v604, %v602
    %v773 = vpack.c.b16 %v605, %v603
    %v774 = vpack.c.b16 %v608, %v606
    %v775 = vpack.c.b16 %v609, %v607
    %v776 = vpack.c.b16 %v612, %v610
    %v777 = vpack.c.b16 %v613, %v611
    %v778 = vpack.c.b16 %v616, %v614
    %v779 = vpack.c.b16 %v617, %v615
    %v780 = vpack.c.b16 %v620, %v618
    %v781 = vpack.c.b16 %v621, %v619
    %v782 = vpack.c.b16 %v624, %v622
    %v783 = vpack.c.b16 %v625, %v623
    %v784 = vpack.c.b16 %v628, %v626
    %v785 = vpack.c.b16 %v629, %v627
    %v786 = vpack.c.b16 %v632, %v630
    %v787 = vpack.c.b16 %v633, %v631
    %v788 = vpack.c.b16 %v636, %v634
    %v789 = vpack.c.b16 %v637, %v635
    %v790 = vpack.c.b16 %v640, %v638
    %v791 = vpack.c.b16 %v641, %v639
    %v792 = vpack.c.b16 %v644, %v642
    %v793 = vpack.c.b16 %v645, %v643
    %v794 = vpack.c.b16 %v648, %v646
    %v795 = vpack.c.b16 %v649, %v647
    %v796 = vpack.c.b16 %v652, %v650
    %v797 = vpack.c.b16 %v653, %v651
    %v798 = vpack.c.b16 %v656, %v654
    %v799 = vpack.c.b16 %v657, %v655
    %v800 = vpack.c.b16 %v660, %v658
    %v801 = vpack.c.b16 %v661, %v659
    %v802 = vpack.c.b16 %v664, %v662
    %v803 = vpack.c.b16 %v665, %v663
    %v804 = vpack.c.b16 %v668, %v666
    %v805 = vpack.c.b16 %v669, %v667
    %v806 = vpack.c.b16 %v672, %v670
    %v807 = vpack.c.b16 %v673, %v671
    %v808 = vpack.c.b16 %v676, %v674
    %v809 = vpack.c.b16 %v677, %v675
    %v810 = vpack.c.b16 %v680, %v678
    %v811 = vpack.c.b16 %v681, %v679
    %v812 = vpack.c.b16 %v684, %v682
    %v813 = vpack.c.b16 %v685, %v683
    %942 = vmatprep.subr.bf16.mxu0 %v687
    %943 = vmatpush1.bf16.msra.mxu0 %v686
    %944 = vmatprep.subr.bf16.mxu0 %v689
    %945 = vmatpush1.bf16.msra.mxu0 %v688
    %946 = vmatprep.subr.bf16.mxu0 %v691
    %947 = vmatpush1.bf16.msra.mxu0 %v690
    %948 = vmatprep.subr.bf16.mxu0 %v693
    %949 = vmatpush1.bf16.msra.mxu0 %v692
    %950 = vmatprep.subr.bf16.mxu0 %v695
    %951 = vmatpush1.bf16.msra.mxu0 %v694
    %952 = vmatprep.subr.bf16.mxu0 %v697
    %953 = vmatpush1.bf16.msra.mxu0 %v696
    %954 = vmatprep.subr.bf16.mxu0 %v699
    %955 = vmatpush1.bf16.msra.mxu0 %v698
    %956 = vmatprep.subr.bf16.mxu0 %v701
    %957 = vmatpush1.bf16.msra.mxu0 %v700
    %958 = vmatprep.subr.bf16.mxu0 %v703
    %959 = vmatpush1.bf16.msra.mxu0 %v702
    %960 = vmatprep.subr.bf16.mxu0 %v705
    %961 = vmatpush1.bf16.msra.mxu0 %v704
    %962 = vmatprep.subr.bf16.mxu0 %v707
    %963 = vmatpush1.bf16.msra.mxu0 %v706
    %964 = vmatprep.subr.bf16.mxu0 %v709
    %965 = vmatpush1.bf16.msra.mxu0 %v708
    %966 = vmatprep.subr.bf16.mxu0 %v711
    %967 = vmatpush1.bf16.msra.mxu0 %v710
    %968 = vmatprep.subr.bf16.mxu0 %v713
    %969 = vmatpush1.bf16.msra.mxu0 %v712
    %970 = vmatprep.subr.bf16.mxu0 %v715
    %971 = vmatpush1.bf16.msra.mxu0 %v714
    %972 = vmatprep.subr.bf16.mxu0 %v717
    %973 = vmatpush1.bf16.msra.mxu0 %v716
    %974 = vmatprep.mubr.bf16.mxu0 %v295
    %975 = vmatmul.mubr.bf16.gmra.mrb[0].mxu0 %v294
    %v976 = vpop.f32.mrb[0].mxu0
    %v977 = vadd.f32 0.0, %v976
    %v978 = vpop.f32.mrb[0].mxu0
    %v979 = vadd.f32 0.0, %v978
    %v980 = vpop.f32.mrb[0].mxu0
    %v981 = vpop.f32.mrb[0].mxu0
    %982 = vdwg.mxu0
    %983 = vmatprep.subr.bf16.mxu0 %v719
    %984 = vmatpush1.bf16.msra.mxu0 %v718
    %985 = vmatprep.subr.bf16.mxu0 %v721
    %986 = vmatpush1.bf16.msra.mxu0 %v720
    %987 = vmatprep.subr.bf16.mxu0 %v723
    %988 = vmatpush1.bf16.msra.mxu0 %v722
    %989 = vmatprep.subr.bf16.mxu0 %v725
    %990 = vmatpush1.bf16.msra.mxu0 %v724
    %991 = vmatprep.subr.bf16.mxu0 %v727
    %992 = vmatpush1.bf16.msra.mxu0 %v726
    %993 = vmatprep.subr.bf16.mxu0 %v729
    %994 = vmatpush1.bf16.msra.mxu0 %v728
    %995 = vmatprep.subr.bf16.mxu0 %v731
    %996 = vmatpush1.bf16.msra.mxu0 %v730
    %997 = vmatprep.subr.bf16.mxu0 %v733
    %998 = vmatpush1.bf16.msra.mxu0 %v732
    %999 = vmatprep.subr.bf16.mxu0 %v735
    %1000 = vmatpush1.bf16.msra.mxu0 %v734
    %1001 = vmatprep.subr.bf16.mxu0 %v737
    %1002 = vmatpush1.bf16.msra.mxu0 %v736
    %1003 = vmatprep.subr.bf16.mxu0 %v739
    %1004 = vmatpush1.bf16.msra.mxu0 %v738
    %1005 = vmatprep.subr.bf16.mxu0 %v741
    %1006 = vmatpush1.bf16.msra.mxu0 %v740
    %1007 = vmatprep.subr.bf16.mxu0 %v743
    %1008 = vmatpush1.bf16.msra.mxu0 %v742
    %1009 = vmatprep.subr.bf16.mxu0 %v745
    %1010 = vmatpush1.bf16.msra.mxu0 %v744
    %1011 = vmatprep.subr.bf16.mxu0 %v747
    %1012 = vmatpush1.bf16.msra.mxu0 %v746
    %1013 = vmatprep.subr.bf16.mxu0 %v749
    %1014 = vmatpush1.bf16.msra.mxu0 %v748
    %1015 = vmatprep.mubr.bf16.mxu0 %v297
    %1016 = vmatmul.mubr.bf16.gmra.mrb[0].mxu0 %v296
    %v1017 = vpop.f32.mrb[0].mxu0
    %v1018 = vadd.f32 %v977, %v1017
    %v1019 = vpop.f32.mrb[0].mxu0
    %v1020 = vadd.f32 %v979, %v1019
    %v1021 = vpop.f32.mrb[0].mxu0
    %v1022 = vpop.f32.mrb[0].mxu0
    %1023 = vdwg.mxu0
    %1024 = vmatprep.subr.bf16.mxu0 %v751
    %1025 = vmatpush1.bf16.msra.mxu0 %v750
    %1026 = vmatprep.subr.bf16.mxu0 %v753
    %1027 = vmatpush1.bf16.msra.mxu0 %v752
    %1028 = vmatprep.subr.bf16.mxu0 %v755
    %1029 = vmatpush1.bf16.msra.mxu0 %v754
    %1030 = vmatprep.subr.bf16.mxu0 %v757
    %1031 = vmatpush1.bf16.msra.mxu0 %v756
    %1032 = vmatprep.subr.bf16.mxu0 %v759
    %1033 = vmatpush1.bf16.msra.mxu0 %v758
    %1034 = vmatprep.subr.bf16.mxu0 %v761
    %1035 = vmatpush1.bf16.msra.mxu0 %v760
    %1036 = vmatprep.subr.bf16.mxu0 %v763
    %1037 = vmatpush1.bf16.msra.mxu0 %v762
    %1038 = vmatprep.subr.bf16.mxu0 %v765
    %1039 = vmatpush1.bf16.msra.mxu0 %v764
    %1040 = vmatprep.subr.bf16.mxu0 %v767
    %1041 = vmatpush1.bf16.msra.mxu0 %v766
    %1042 = vmatprep.subr.bf16.mxu0 %v769
    %1043 = vmatpush1.bf16.msra.mxu0 %v768
    %1044 = vmatprep.subr.bf16.mxu0 %v771
    %1045 = vmatpush1.bf16.msra.mxu0 %v770
    %1046 = vmatprep.subr.bf16.mxu0 %v773
    %1047 = vmatpush1.bf16.msra.mxu0 %v772
    %1048 = vmatprep.subr.bf16.mxu0 %v775
    %1049 = vmatpush1.bf16.msra.mxu0 %v774
    %1050 = vmatprep.subr.bf16.mxu0 %v777
    %1051 = vmatpush1.bf16.msra.mxu0 %v776
    %1052 = vmatprep.subr.bf16.mxu0 %v779
    %1053 = vmatpush1.bf16.msra.mxu0 %v778
    %1054 = vmatprep.subr.bf16.mxu0 %v781
    %1055 = vmatpush1.bf16.msra.mxu0 %v780
    %1056 = vmatprep.mubr.bf16.mxu0 %v299
    %1057 = vmatmul.mubr.bf16.gmra.mrb[0].mxu0 %v298
    %v1058 = vpop.f32.mrb[0].mxu0
    %v1059 = vadd.f32 %v1018, %v1058
    %v1060 = vpop.f32.mrb[0].mxu0
    %v1061 = vadd.f32 %v1020, %v1060
    %v1062 = vpop.f32.mrb[0].mxu0
    %v1063 = vpop.f32.mrb[0].mxu0
    %1064 = vdwg.mxu0
    %1065 = vmatprep.subr.bf16.mxu0 %v783
    %1066 = vmatpush1.bf16.msra.mxu0 %v782
    %1067 = vmatprep.subr.bf16.mxu0 %v785
    %1068 = vmatpush1.bf16.msra.mxu0 %v784
    %1069 = vmatprep.subr.bf16.mxu0 %v787
    %1070 = vmatpush1.bf16.msra.mxu0 %v786
    %1071 = vmatprep.subr.bf16.mxu0 %v789
    %1072 = vmatpush1.bf16.msra.mxu0 %v788
    %1073 = vmatprep.subr.bf16.mxu0 %v791
    %1074 = vmatpush1.bf16.msra.mxu0 %v790
    %1075 = vmatprep.subr.bf16.mxu0 %v793
    %1076 = vmatpush1.bf16.msra.mxu0 %v792
    %1077 = vmatprep.subr.bf16.mxu0 %v795
    %1078 = vmatpush1.bf16.msra.mxu0 %v794
    %1079 = vmatprep.subr.bf16.mxu0 %v797
    %1080 = vmatpush1.bf16.msra.mxu0 %v796
    %1081 = vmatprep.subr.bf16.mxu0 %v799
    %1082 = vmatpush1.bf16.msra.mxu0 %v798
    %1083 = vmatprep.subr.bf16.mxu0 %v801
    %1084 = vmatpush1.bf16.msra.mxu0 %v800
    %1085 = vmatprep.subr.bf16.mxu0 %v803
    %1086 = vmatpush1.bf16.msra.mxu0 %v802
    %1087 = vmatprep.subr.bf16.mxu0 %v805
    %1088 = vmatpush1.bf16.msra.mxu0 %v804
    %1089 = vmatprep.subr.bf16.mxu0 %v807
    %1090 = vmatpush1.bf16.msra.mxu0 %v806
    %1091 = vmatprep.subr.bf16.mxu0 %v809
    %1092 = vmatpush1.bf16.msra.mxu0 %v808
    %1093 = vmatprep.subr.bf16.mxu0 %v811
    %1094 = vmatpush1.bf16.msra.mxu0 %v810
    %1095 = vmatprep.subr.bf16.mxu0 %v813
    %1096 = vmatpush1.bf16.msra.mxu0 %v812
    %1097 = vmatprep.mubr.bf16.mxu0 %v301
    %1098 = vmatmul.mubr.bf16.gmra.mrb[0].mxu0 %v300
    %v1099 = vpop.f32.mrb[0].mxu0
    %v1100 = vadd.f32 %v1059, %v1099
    %v1101 = vpop.f32.mrb[0].mxu0
    %v1102 = vadd.f32 %v1061, %v1101
    %v1103 = vpop.f32.mrb[0].mxu0
    %v1104 = vpop.f32.mrb[0].mxu0
    %1105 = vdwg.mxu0
    %v1106 = vpack.c.bf16 %v286, %v286
    %v1107 = vpack.c.bf16 %v287, %v287
    %v1108 = vpack.c.bf16 %v288, %v288
    %v1109 = vpack.c.bf16 %v289, %v289
    %v1110 = vpack.c.bf16 %v290, %v290
    %v1111 = vpack.c.bf16 %v291, %v291
    %v1112 = vpack.c.bf16 %v292, %v292
    %v1113 = vpack.c.bf16 %v293, %v293
    %1114 = vmatprep.subr.bf16.mxu0 %v687
    %1115 = vmatpush1.bf16.msra.mxu0 %v686
    %1116 = vmatprep.subr.bf16.mxu0 %v689
    %1117 = vmatpush1.bf16.msra.mxu0 %v688
    %1118 = vmatprep.subr.bf16.mxu0 %v691
    %1119 = vmatpush1.bf16.msra.mxu0 %v690
    %1120 = vmatprep.subr.bf16.mxu0 %v693
    %1121 = vmatpush1.bf16.msra.mxu0 %v692
    %1122 = vmatprep.subr.bf16.mxu0 %v695
    %1123 = vmatpush1.bf16.msra.mxu0 %v694
    %1124 = vmatprep.subr.bf16.mxu0 %v697
    %1125 = vmatpush1.bf16.msra.mxu0 %v696
    %1126 = vmatprep.subr.bf16.mxu0 %v699
    %1127 = vmatpush1.bf16.msra.mxu0 %v698
    %1128 = vmatprep.subr.bf16.mxu0 %v701
    %1129 = vmatpush1.bf16.msra.mxu0 %v700
    %1130 = vmatprep.subr.bf16.mxu0 %v703
    %1131 = vmatpush1.bf16.msra.mxu0 %v702
    %1132 = vmatprep.subr.bf16.mxu0 %v705
    %1133 = vmatpush1.bf16.msra.mxu0 %v704
    %1134 = vmatprep.subr.bf16.mxu0 %v707
    %1135 = vmatpush1.bf16.msra.mxu0 %v706
    %1136 = vmatprep.subr.bf16.mxu0 %v709
    %1137 = vmatpush1.bf16.msra.mxu0 %v708
    %1138 = vmatprep.subr.bf16.mxu0 %v711
    %1139 = vmatpush1.bf16.msra.mxu0 %v710
    %1140 = vmatprep.subr.bf16.mxu0 %v713
    %1141 = vmatpush1.bf16.msra.mxu0 %v712
    %1142 = vmatprep.subr.bf16.mxu0 %v715
    %1143 = vmatpush1.bf16.msra.mxu0 %v714
    %1144 = vmatprep.subr.bf16.mxu0 %v717
    %1145 = vmatpush1.bf16.msra.mxu0 %v716
    %1146 = vmatprep.mubr.bf16.mxu0 %v1107
    %1147 = vmatmul.mubr.bf16.gmra.mrb[0].mxu0 %v1106
    %v1148 = vpop.f32.mrb[0].mxu0
    %v1149 = vadd.f32 0.0, %v1148
    %v1150 = vpop.f32.mrb[0].mxu0
    %v1151 = vadd.f32 0.0, %v1150
    %v1152 = vpop.f32.mrb[0].mxu0
    %v1153 = vpop.f32.mrb[0].mxu0
    %1154 = vdwg.mxu0
    %1155 = vmatprep.subr.bf16.mxu0 %v719
    %1156 = vmatpush1.bf16.msra.mxu0 %v718
    %1157 = vmatprep.subr.bf16.mxu0 %v721
    %1158 = vmatpush1.bf16.msra.mxu0 %v720
    %1159 = vmatprep.subr.bf16.mxu0 %v723
    %1160 = vmatpush1.bf16.msra.mxu0 %v722
    %1161 = vmatprep.subr.bf16.mxu0 %v725
    %1162 = vmatpush1.bf16.msra.mxu0 %v724
    %1163 = vmatprep.subr.bf16.mxu0 %v727
    %1164 = vmatpush1.bf16.msra.mxu0 %v726
    %1165 = vmatprep.subr.bf16.mxu0 %v729
    %1166 = vmatpush1.bf16.msra.mxu0 %v728
    %1167 = vmatprep.subr.bf16.mxu0 %v731
    %1168 = vmatpush1.bf16.msra.mxu0 %v730
    %1169 = vmatprep.subr.bf16.mxu0 %v733
    %1170 = vmatpush1.bf16.msra.mxu0 %v732
    %1171 = vmatprep.subr.bf16.mxu0 %v735
    %1172 = vmatpush1.bf16.msra.mxu0 %v734
    %1173 = vmatprep.subr.bf16.mxu0 %v737
    %1174 = vmatpush1.bf16.msra.mxu0 %v736
    %1175 = vmatprep.subr.bf16.mxu0 %v739
    %1176 = vmatpush1.bf16.msra.mxu0 %v738
    %1177 = vmatprep.subr.bf16.mxu0 %v741
    %1178 = vmatpush1.bf16.msra.mxu0 %v740
    %1179 = vmatprep.subr.bf16.mxu0 %v743
    %1180 = vmatpush1.bf16.msra.mxu0 %v742
    %1181 = vmatprep.subr.bf16.mxu0 %v745
    %1182 = vmatpush1.bf16.msra.mxu0 %v744
    %1183 = vmatprep.subr.bf16.mxu0 %v747
    %1184 = vmatpush1.bf16.msra.mxu0 %v746
    %1185 = vmatprep.subr.bf16.mxu0 %v749
    %1186 = vmatpush1.bf16.msra.mxu0 %v748
    %1187 = vmatprep.mubr.bf16.mxu0 %v1109
    %1188 = vmatmul.mubr.bf16.gmra.mrb[0].mxu0 %v1108
    %v1189 = vpop.f32.mrb[0].mxu0
    %v1190 = vadd.f32 %v1149, %v1189
    %v1191 = vpop.f32.mrb[0].mxu0
    %v1192 = vadd.f32 %v1151, %v1191
    %v1193 = vpop.f32.mrb[0].mxu0
    %v1194 = vpop.f32.mrb[0].mxu0
    %1195 = vdwg.mxu0
    %1196 = vmatprep.subr.bf16.mxu0 %v751
    %1197 = vmatpush1.bf16.msra.mxu0 %v750
    %1198 = vmatprep.subr.bf16.mxu0 %v753
    %1199 = vmatpush1.bf16.msra.mxu0 %v752
    %1200 = vmatprep.subr.bf16.mxu0 %v755
    %1201 = vmatpush1.bf16.msra.mxu0 %v754
    %1202 = vmatprep.subr.bf16.mxu0 %v757
    %1203 = vmatpush1.bf16.msra.mxu0 %v756
    %1204 = vmatprep.subr.bf16.mxu0 %v759
    %1205 = vmatpush1.bf16.msra.mxu0 %v758
    %1206 = vmatprep.subr.bf16.mxu0 %v761
    %1207 = vmatpush1.bf16.msra.mxu0 %v760
    %1208 = vmatprep.subr.bf16.mxu0 %v763
    %1209 = vmatpush1.bf16.msra.mxu0 %v762
    %1210 = vmatprep.subr.bf16.mxu0 %v765
    %1211 = vmatpush1.bf16.msra.mxu0 %v764
    %1212 = vmatprep.subr.bf16.mxu0 %v767
    %1213 = vmatpush1.bf16.msra.mxu0 %v766
    %1214 = vmatprep.subr.bf16.mxu0 %v769
    %1215 = vmatpush1.bf16.msra.mxu0 %v768
    %1216 = vmatprep.subr.bf16.mxu0 %v771
    %1217 = vmatpush1.bf16.msra.mxu0 %v770
    %1218 = vmatprep.subr.bf16.mxu0 %v773
    %1219 = vmatpush1.bf16.msra.mxu0 %v772
    %1220 = vmatprep.subr.bf16.mxu0 %v775
    %1221 = vmatpush1.bf16.msra.mxu0 %v774
    %1222 = vmatprep.subr.bf16.mxu0 %v777
    %1223 = vmatpush1.bf16.msra.mxu0 %v776
    %1224 = vmatprep.subr.bf16.mxu0 %v779
    %1225 = vmatpush1.bf16.msra.mxu0 %v778
    %1226 = vmatprep.subr.bf16.mxu0 %v781
    %1227 = vmatpush1.bf16.msra.mxu0 %v780
    %1228 = vmatprep.mubr.bf16.mxu0 %v1111
    %1229 = vmatmul.mubr.bf16.gmra.mrb[0].mxu0 %v1110
    %v1230 = vpop.f32.mrb[0].mxu0
    %v1231 = vadd.f32 %v1190, %v1230
    %v1232 = vpop.f32.mrb[0].mxu0
    %v1233 = vadd.f32 %v1192, %v1232
    %v1234 = vpop.f32.mrb[0].mxu0
    %v1235 = vpop.f32.mrb[0].mxu0
    %1236 = vdwg.mxu0
    %1237 = vmatprep.subr.bf16.mxu0 %v783
    %1238 = vmatpush1.bf16.msra.mxu0 %v782
    %1239 = vmatprep.subr.bf16.mxu0 %v785
    %1240 = vmatpush1.bf16.msra.mxu0 %v784
    %1241 = vmatprep.subr.bf16.mxu0 %v787
    %1242 = vmatpush1.bf16.msra.mxu0 %v786
    %1243 = vmatprep.subr.bf16.mxu0 %v789
    %1244 = vmatpush1.bf16.msra.mxu0 %v788
    %1245 = vmatprep.subr.bf16.mxu0 %v791
    %1246 = vmatpush1.bf16.msra.mxu0 %v790
    %1247 = vmatprep.subr.bf16.mxu0 %v793
    %1248 = vmatpush1.bf16.msra.mxu0 %v792
    %1249 = vmatprep.subr.bf16.mxu0 %v795
    %1250 = vmatpush1.bf16.msra.mxu0 %v794
    %1251 = vmatprep.subr.bf16.mxu0 %v797
    %1252 = vmatpush1.bf16.msra.mxu0 %v796
    %1253 = vmatprep.subr.bf16.mxu0 %v799
    %1254 = vmatpush1.bf16.msra.mxu0 %v798
    %1255 = vmatprep.subr.bf16.mxu0 %v801
    %1256 = vmatpush1.bf16.msra.mxu0 %v800
    %1257 = vmatprep.subr.bf16.mxu0 %v803
    %1258 = vmatpush1.bf16.msra.mxu0 %v802
    %1259 = vmatprep.subr.bf16.mxu0 %v805
    %1260 = vmatpush1.bf16.msra.mxu0 %v804
    %1261 = vmatprep.subr.bf16.mxu0 %v807
    %1262 = vmatpush1.bf16.msra.mxu0 %v806
    %1263 = vmatprep.subr.bf16.mxu0 %v809
    %1264 = vmatpush1.bf16.msra.mxu0 %v808
    %1265 = vmatprep.subr.bf16.mxu0 %v811
    %1266 = vmatpush1.bf16.msra.mxu0 %v810
    %1267 = vmatprep.subr.bf16.mxu0 %v813
    %1268 = vmatpush1.bf16.msra.mxu0 %v812
    %1269 = vmatprep.mubr.bf16.mxu0 %v1113
    %1270 = vmatmul.mubr.bf16.gmra.mrb[0].mxu0 %v1112
    %v1271 = vpop.f32.mrb[0].mxu0
    %v1272 = vadd.f32 %v1231, %v1271
    %v1273 = vpop.f32.mrb[0].mxu0
    %v1274 = vadd.f32 %v1233, %v1273
    %v1275 = vpop.f32.mrb[0].mxu0
    %v1276 = vpop.f32.mrb[0].mxu0
    %1277 = vdwg.mxu0
    %v1278 = vmul.f32 %v286, %v62
    %v1279 = vmul.f32 %v287, %v63
    %v1280 = vmul.f32 %v288, %v64
    %v1281 = vmul.f32 %v289, %v65
    %v1282 = vmul.f32 %v290, %v66
    %v1283 = vmul.f32 %v291, %v67
    %v1284 = vmul.f32 %v292, %v68
    %v1285 = vmul.f32 %v293, %v69
    %v1286 = vpack.c.bf16 %v1278, %v1278
    %v1287 = vpack.c.bf16 %v1279, %v1279
    %v1288 = vpack.c.bf16 %v1280, %v1280
    %v1289 = vpack.c.bf16 %v1281, %v1281
    %v1290 = vpack.c.bf16 %v1282, %v1282
    %v1291 = vpack.c.bf16 %v1283, %v1283
    %v1292 = vpack.c.bf16 %v1284, %v1284
    %v1293 = vpack.c.bf16 %v1285, %v1285
    %1294 = vmatprep.subr.bf16.mxu0 %v687
    %1295 = vmatpush1.bf16.msra.mxu0 %v686
    %1296 = vmatprep.subr.bf16.mxu0 %v689
    %1297 = vmatpush1.bf16.msra.mxu0 %v688
    %1298 = vmatprep.subr.bf16.mxu0 %v691
    %1299 = vmatpush1.bf16.msra.mxu0 %v690
    %1300 = vmatprep.subr.bf16.mxu0 %v693
    %1301 = vmatpush1.bf16.msra.mxu0 %v692
    %1302 = vmatprep.subr.bf16.mxu0 %v695
    %1303 = vmatpush1.bf16.msra.mxu0 %v694
    %1304 = vmatprep.subr.bf16.mxu0 %v697
    %1305 = vmatpush1.bf16.msra.mxu0 %v696
    %1306 = vmatprep.subr.bf16.mxu0 %v699
    %1307 = vmatpush1.bf16.msra.mxu0 %v698
    %1308 = vmatprep.subr.bf16.mxu0 %v701
    %1309 = vmatpush1.bf16.msra.mxu0 %v700
    %1310 = vmatprep.subr.bf16.mxu0 %v703
    %1311 = vmatpush1.bf16.msra.mxu0 %v702
    %1312 = vmatprep.subr.bf16.mxu0 %v705
    %1313 = vmatpush1.bf16.msra.mxu0 %v704
    %1314 = vmatprep.subr.bf16.mxu0 %v707
    %1315 = vmatpush1.bf16.msra.mxu0 %v706
    %1316 = vmatprep.subr.bf16.mxu0 %v709
    %1317 = vmatpush1.bf16.msra.mxu0 %v708
    %1318 = vmatprep.subr.bf16.mxu0 %v711
    %1319 = vmatpush1.bf16.msra.mxu0 %v710
    %1320 = vmatprep.subr.bf16.mxu0 %v713
    %1321 = vmatpush1.bf16.msra.mxu0 %v712
    %1322 = vmatprep.subr.bf16.mxu0 %v715
    %1323 = vmatpush1.bf16.msra.mxu0 %v714
    %1324 = vmatprep.subr.bf16.mxu0 %v717
    %1325 = vmatpush1.bf16.msra.mxu0 %v716
    %1326 = vmatprep.mubr.bf16.mxu0 %v1287
    %1327 = vmatmul.mubr.bf16.gmra.mrb[0].mxu0 %v1286
    %v1328 = vpop.f32.mrb[0].mxu0
    %v1329 = vadd.f32 0.0, %v1328
    %v1330 = vpop.f32.mrb[0].mxu0
    %v1331 = vadd.f32 0.0, %v1330
    %v1332 = vpop.f32.mrb[0].mxu0
    %v1333 = vpop.f32.mrb[0].mxu0
    %1334 = vdwg.mxu0
    %1335 = vmatprep.subr.bf16.mxu0 %v719
    %1336 = vmatpush1.bf16.msra.mxu0 %v718
    %1337 = vmatprep.subr.bf16.mxu0 %v721
    %1338 = vmatpush1.bf16.msra.mxu0 %v720
    %1339 = vmatprep.subr.bf16.mxu0 %v723
    %1340 = vmatpush1.bf16.msra.mxu0 %v722
    %1341 = vmatprep.subr.bf16.mxu0 %v725
    %1342 = vmatpush1.bf16.msra.mxu0 %v724
    %1343 = vmatprep.subr.bf16.mxu0 %v727
    %1344 = vmatpush1.bf16.msra.mxu0 %v726
    %1345 = vmatprep.subr.bf16.mxu0 %v729
    %1346 = vmatpush1.bf16.msra.mxu0 %v728
    %1347 = vmatprep.subr.bf16.mxu0 %v731
    %1348 = vmatpush1.bf16.msra.mxu0 %v730
    %1349 = vmatprep.subr.bf16.mxu0 %v733
    %1350 = vmatpush1.bf16.msra.mxu0 %v732
    %1351 = vmatprep.subr.bf16.mxu0 %v735
    %1352 = vmatpush1.bf16.msra.mxu0 %v734
    %1353 = vmatprep.subr.bf16.mxu0 %v737
    %1354 = vmatpush1.bf16.msra.mxu0 %v736
    %1355 = vmatprep.subr.bf16.mxu0 %v739
    %1356 = vmatpush1.bf16.msra.mxu0 %v738
    %1357 = vmatprep.subr.bf16.mxu0 %v741
    %1358 = vmatpush1.bf16.msra.mxu0 %v740
    %1359 = vmatprep.subr.bf16.mxu0 %v743
    %1360 = vmatpush1.bf16.msra.mxu0 %v742
    %1361 = vmatprep.subr.bf16.mxu0 %v745
    %1362 = vmatpush1.bf16.msra.mxu0 %v744
    %1363 = vmatprep.subr.bf16.mxu0 %v747
    %1364 = vmatpush1.bf16.msra.mxu0 %v746
    %1365 = vmatprep.subr.bf16.mxu0 %v749
    %1366 = vmatpush1.bf16.msra.mxu0 %v748
    %1367 = vmatprep.mubr.bf16.mxu0 %v1289
    %1368 = vmatmul.mubr.bf16.gmra.mrb[0].mxu0 %v1288
    %v1369 = vpop.f32.mrb[0].mxu0
    %v1370 = vadd.f32 %v1329, %v1369
    %v1371 = vpop.f32.mrb[0].mxu0
    %v1372 = vadd.f32 %v1331, %v1371
    %v1373 = vpop.f32.mrb[0].mxu0
    %v1374 = vpop.f32.mrb[0].mxu0
    %1375 = vdwg.mxu0
    %1376 = vmatprep.subr.bf16.mxu0 %v751
    %1377 = vmatpush1.bf16.msra.mxu0 %v750
    %1378 = vmatprep.subr.bf16.mxu0 %v753
    %1379 = vmatpush1.bf16.msra.mxu0 %v752
    %1380 = vmatprep.subr.bf16.mxu0 %v755
    %1381 = vmatpush1.bf16.msra.mxu0 %v754
    %1382 = vmatprep.subr.bf16.mxu0 %v757
    %1383 = vmatpush1.bf16.msra.mxu0 %v756
    %1384 = vmatprep.subr.bf16.mxu0 %v759
    %1385 = vmatpush1.bf16.msra.mxu0 %v758
    %1386 = vmatprep.subr.bf16.mxu0 %v761
    %1387 = vmatpush1.bf16.msra.mxu0 %v760
    %1388 = vmatprep.subr.bf16.mxu0 %v763
    %1389 = vmatpush1.bf16.msra.mxu0 %v762
    %1390 = vmatprep.subr.bf16.mxu0 %v765
    %1391 = vmatpush1.bf16.msra.mxu0 %v764
    %1392 = vmatprep.subr.bf16.mxu0 %v767
    %1393 = vmatpush1.bf16.msra.mxu0 %v766
    %1394 = vmatprep.subr.bf16.mxu0 %v769
    %1395 = vmatpush1.bf16.msra.mxu0 %v768
    %1396 = vmatprep.subr.bf16.mxu0 %v771
    %1397 = vmatpush1.bf16.msra.mxu0 %v770
    %1398 = vmatprep.subr.bf16.mxu0 %v773
    %1399 = vmatpush1.bf16.msra.mxu0 %v772
    %1400 = vmatprep.subr.bf16.mxu0 %v775
    %1401 = vmatpush1.bf16.msra.mxu0 %v774
    %1402 = vmatprep.subr.bf16.mxu0 %v777
    %1403 = vmatpush1.bf16.msra.mxu0 %v776
    %1404 = vmatprep.subr.bf16.mxu0 %v779
    %1405 = vmatpush1.bf16.msra.mxu0 %v778
    %1406 = vmatprep.subr.bf16.mxu0 %v781
    %1407 = vmatpush1.bf16.msra.mxu0 %v780
    %1408 = vmatprep.mubr.bf16.mxu0 %v1291
    %1409 = vmatmul.mubr.bf16.gmra.mrb[0].mxu0 %v1290
    %v1410 = vpop.f32.mrb[0].mxu0
    %v1411 = vadd.f32 %v1370, %v1410
    %v1412 = vpop.f32.mrb[0].mxu0
    %v1413 = vadd.f32 %v1372, %v1412
    %v1414 = vpop.f32.mrb[0].mxu0
    %v1415 = vpop.f32.mrb[0].mxu0
    %1416 = vdwg.mxu0
    %1417 = vmatprep.subr.bf16.mxu0 %v783
    %1418 = vmatpush1.bf16.msra.mxu0 %v782
    %1419 = vmatprep.subr.bf16.mxu0 %v785
    %1420 = vmatpush1.bf16.msra.mxu0 %v784
    %1421 = vmatprep.subr.bf16.mxu0 %v787
    %1422 = vmatpush1.bf16.msra.mxu0 %v786
    %1423 = vmatprep.subr.bf16.mxu0 %v789
    %1424 = vmatpush1.bf16.msra.mxu0 %v788
    %1425 = vmatprep.subr.bf16.mxu0 %v791
    %1426 = vmatpush1.bf16.msra.mxu0 %v790
    %1427 = vmatprep.subr.bf16.mxu0 %v793
    %1428 = vmatpush1.bf16.msra.mxu0 %v792
    %1429 = vmatprep.subr.bf16.mxu0 %v795
    %1430 = vmatpush1.bf16.msra.mxu0 %v794
    %1431 = vmatprep.subr.bf16.mxu0 %v797
    %1432 = vmatpush1.bf16.msra.mxu0 %v796
    %1433 = vmatprep.subr.bf16.mxu0 %v799
    %1434 = vmatpush1.bf16.msra.mxu0 %v798
    %1435 = vmatprep.subr.bf16.mxu0 %v801
    %1436 = vmatpush1.bf16.msra.mxu0 %v800
    %1437 = vmatprep.subr.bf16.mxu0 %v803
    %1438 = vmatpush1.bf16.msra.mxu0 %v802
    %1439 = vmatprep.subr.bf16.mxu0 %v805
    %1440 = vmatpush1.bf16.msra.mxu0 %v804
    %1441 = vmatprep.subr.bf16.mxu0 %v807
    %1442 = vmatpush1.bf16.msra.mxu0 %v806
    %1443 = vmatprep.subr.bf16.mxu0 %v809
    %1444 = vmatpush1.bf16.msra.mxu0 %v808
    %1445 = vmatprep.subr.bf16.mxu0 %v811
    %1446 = vmatpush1.bf16.msra.mxu0 %v810
    %1447 = vmatprep.subr.bf16.mxu0 %v813
    %1448 = vmatpush1.bf16.msra.mxu0 %v812
    %1449 = vmatprep.mubr.bf16.mxu0 %v1293
    %1450 = vmatmul.mubr.bf16.gmra.mrb[0].mxu0 %v1292
    %v1451 = vpop.f32.mrb[0].mxu0
    %v1452 = vadd.f32 %v1411, %v1451
    %v1453 = vpop.f32.mrb[0].mxu0
    %v1454 = vadd.f32 %v1413, %v1453
    %v1455 = vpop.f32.mrb[0].mxu0
    %v1456 = vpop.f32.mrb[0].mxu0
    %1457 = vdwg.mxu0
    %v1458 = vlaneseq
    %v1459 = vand.u32 %v1458, 127
    %vm1460 = vcmp.lt.s32.totalorder %v1459, 10
    %v1461 = vsel %vm1460, 0.0, -1e+30
    %1462 = vset.pattern.permute.xlu0 0
    %1463 = vperm.xlu0 %1462, %v250
    %v1464 = vpop.permute.xlu0 %1463
    %vm1465 = vcmp.eq.s32.totalorder %v1459, %v1464
    %v1466 = vsel %vm1465, 1, 0
    %v1467 = vcvt.s32.f32 %v1466
    %v1468 = vadd.f32 %v1102, %v1461
    %1469 = vmax.xlane.f32.xlu0 %v1468
    %v1470 = vpop.xlane.xlu0 %1469
    %v1471 = vsub.f32 %v1468, %v1470
    %v1472 = vmul.f32 %v1471, 1.442695
    %v1473 = vpow.pop %v1472
    %1474 = vadd.xlane.f32.xlu0 %v1473
    %v1475 = vpop.xlane.xlu0 %1474
    %v1476 = vrcp.pop %v1475
    %v1477 = vmul.f32 %v1473, %v1476
    %v1478 = vlog2.pop %v1475
    %v1479 = vmul.f32 %v1478, 0.6931472
    %v1480 = vsub.f32 %v1471, %v1479
    %v1481 = vmul.f32 %v1467, %v1480
    %1482 = vadd.xlane.f32.xlu0 %v1481
    %v1483 = vpop.xlane.xlu0 %1482
    %v1484 = vsub.f32 0.0, %v1483
    %v1485 = vadd.f32 %v1100, %v1461
    %1486 = vmax.xlane.f32.xlu0 %v1485
    %v1487 = vpop.xlane.xlu0 %1486
    %v1488 = vsub.f32 %v1485, %v1487
    %v1489 = vmul.f32 %v1488, 1.442695
    %v1490 = vpow.pop %v1489
    %1491 = vadd.xlane.f32.xlu0 %v1490
    %v1492 = vpop.xlane.xlu0 %1491
    %v1493 = vrcp.pop %v1492
    %v1494 = vmul.f32 %v1490, %v1493
    %v1495 = vlog2.pop %v1492
    %v1496 = vmul.f32 %v1495, 0.6931472
    %v1497 = vsub.f32 %v1488, %v1496
    %v1498 = vmul.f32 %v1467, %v1497
    %1499 = vadd.xlane.f32.xlu0 %v1498
    %v1500 = vpop.xlane.xlu0 %1499
    %v1501 = vsub.f32 0.0, %v1500
    %vm1502 = vcmask 7168
    %v1503 = vsel %vm1502, %v1484, 0.0
    %1504 = vadd.xlane.f32.xlu0 %v1503
    %v1505 = vpop.xlane.xlu0 %1504
    %v1506 = vrot.slane %v1505, 4
    %v1507 = vadd.f32 %v1505, %v1506
    %v1508 = vrot.slane %v1507, 2
    %v1509 = vadd.f32 %v1507, %v1508
    %v1510 = vrot.slane %v1509, 1
    %v1511 = vadd.f32 %v1509, %v1510
    %s1512 = vtos %v1511
    %v1513 = vsel %vm1502, %v1501, 0.0
    %1514 = vadd.xlane.f32.xlu0 %v1513
    %v1515 = vpop.xlane.xlu0 %1514
    %v1516 = vrot.slane %v1515, 4
    %v1517 = vadd.f32 %v1515, %v1516
    %v1518 = vrot.slane %v1517, 2
    %v1519 = vadd.f32 %v1517, %v1518
    %v1520 = vrot.slane %v1519, 1
    %v1521 = vadd.f32 %v1519, %v1520
    %s1522 = vtos %v1521
    %v1523 = vsub.f32 %v1477, %v1467
    %1525 = vset.pattern.permute.xlu0 0
    %1526 = vperm.xlu0 %1525, %v253
    %v1527 = vpop.permute.xlu0 %1526
    %v1529 = vmul.f32 %v1527, %v1523
    %v1530 = vmul.f32 %v253, -1.0
    %v1531 = vsub.f32 %v1494, %v1467
    %1533 = vset.pattern.permute.xlu0 0
    %1534 = vperm.xlu0 %1533, %v1530
    %v1535 = vpop.permute.xlu0 %1534
    %v1537 = vmul.f32 %v1535, %v1531
    %v1538 = vmul.f32 %v1537, %v1272
    %1539 = vadd.xlane.f32.xlu0 %v1538
    %v1540 = vpop.xlane.xlu0 %1539
    %v1541 = vrot.slane %v1540, 4
    %v1542 = vadd.f32 %v1540, %v1541
    %v1543 = vrot.slane %v1542, 2
    %v1544 = vadd.f32 %v1542, %v1543
    %v1545 = vrot.slane %v1544, 1
    %v1546 = vadd.f32 %v1544, %v1545
    %s1547 = vtos %v1546
    %v1548 = vmul.f32 %v1529, %v1274
    %1549 = vadd.xlane.f32.xlu0 %v1548
    %v1550 = vpop.xlane.xlu0 %1549
    %v1551 = vrot.slane %v1550, 4
    %v1552 = vadd.f32 %v1550, %v1551
    %v1553 = vrot.slane %v1552, 2
    %v1554 = vadd.f32 %v1552, %v1553
    %v1555 = vrot.slane %v1554, 1
    %v1556 = vadd.f32 %v1554, %v1555
    %s1557 = vtos %v1556
    %s1558 = sadd.f32 %s1547, %s1557
    %v1559 = vmul.f32 %v1537, %v1452
    %1560 = vadd.xlane.f32.xlu0 %v1559
    %v1561 = vpop.xlane.xlu0 %1560
    %v1562 = vrot.slane %v1561, 4
    %v1563 = vadd.f32 %v1561, %v1562
    %v1564 = vrot.slane %v1563, 2
    %v1565 = vadd.f32 %v1563, %v1564
    %v1566 = vrot.slane %v1565, 1
    %v1567 = vadd.f32 %v1565, %v1566
    %s1568 = vtos %v1567
    %v1569 = vmul.f32 %v1529, %v1454
    %1570 = vadd.xlane.f32.xlu0 %v1569
    %v1571 = vpop.xlane.xlu0 %1570
    %v1572 = vrot.slane %v1571, 4
    %v1573 = vadd.f32 %v1571, %v1572
    %v1574 = vrot.slane %v1573, 2
    %v1575 = vadd.f32 %v1573, %v1574
    %v1576 = vrot.slane %v1575, 1
    %v1577 = vadd.f32 %v1575, %v1576
    %s1578 = vtos %v1577
    %s1579 = sadd.f32 %s1568, %s1578
    %vm1580 = vcmp.eq.s32.totalorder %v1459, 0
    %v1581 = vstv %s1512
    %v1582 = vsel %vm1580, %v1581, 0.0
    %vm1583 = vcmp.eq.s32.totalorder %v1459, 1
    %v1584 = vstv %s1522
    %v1585 = vsel %vm1583, %v1584, %v1582
    %vm1586 = vcmp.eq.s32.totalorder %v1459, 2
    %v1587 = vstv %s1558
    %v1588 = vsel %vm1586, %v1587, %v1585
    %vm1589 = vcmp.eq.s32.totalorder %v1459, 3
    %v1590 = vstv %s1579
    %v1591 = vsel %vm1589, %v1590, %v1588
    %1592 = vst [vmem:[#allocation10] sm:$0xff] %v1591
    // Predicated region
    $region30: #{tpu_custom_call.1} parent=1 // pred_check
      _
    $region31: #{tpu_custom_call.1} parent=1 // pred_check_branch
      %1594 = sbr.rel (0) target = $region33
    $region32: #{tpu_custom_call.1} parent=1 // pred_region
      %s1596 = ssub.s32 2048, 2048
      %1597 = vsyncadd [#allocation4], %s1596
      %s1598 = sshll.u32 [#allocation9], 4
      %s1599 = int_to_ptr.vmem [resolvable:$true] %s1598
      %1604 = dma.vmem_to_hbm [thread:$0]  %s1599, 2048, %s4, [#allocation4], 1024, 1024, 64
    $region33: #{tpu_custom_call.1} parent=1 // pred_fallthru
      _
    // Predicated region
    $region34: #{tpu_custom_call.1} parent=1 // pred_check
      _
    $region35: #{tpu_custom_call.1} parent=1 // pred_check_branch
      %1606 = sbr.rel (0) target = $region37
    $region36: #{tpu_custom_call.1} parent=1 // pred_region
      %s1608 = ssub.s32 128, 128
      %1609 = vsyncadd [#allocation11], %s1608
      %s1611 = sshll.u32 [#allocation10], 4
      %s1612 = int_to_ptr.vmem [resolvable:$true] %s1611
      %1614 = dma.vmem_to_hbm [thread:$0]  %s1612, 128, %s5, [#allocation11]
    $region37: #{tpu_custom_call.1} parent=1 // pred_fallthru
      _
    // Predicated region
    $region38: #{tpu_custom_call.1} parent=1 // pred_check
      _
    $region39: #{tpu_custom_call.1} parent=1 // pred_check_branch
      %1616 = sbr.rel (0) target = $region41
    $region40: #{tpu_custom_call.1} parent=1 // pred_region
      %1617 = dma.done [#allocation4], 2048
    $region41: #{tpu_custom_call.1} parent=1 // pred_fallthru
      _
    // Predicated region
    $region42: #{tpu_custom_call.1} parent=1 // pred_check
      _
    $region43: #{tpu_custom_call.1} parent=1 // pred_check_branch
      %1619 = sbr.rel (0) target = $region45
    $region44: #{tpu_custom_call.1} parent=1 // pred_region
      %1620 = dma.done [#allocation11], 128
    $region45: #{tpu_custom_call.1} parent=1 // pred_fallthru
      _
    %1621 = vsyncpa [#allocation3], 1
    %1622 = vsyncpa [#allocation8], 1
    %1623 = vsyncpa [#allocation4], 1
    %1624 = vsyncpa [#allocation11], 1
    %1625 = vsyncpa [#allocation5], 1

</llo_original>
